<compile_context>
chip_gen: v7x
topology: tpu7x:2x2x1
jax: 0.10.0
libtpu: 0.0.40
codegen_flags: <defaults>
</compile_context>

<pallas_src>
import functools

import jax
import jax.numpy as jnp
from jax.experimental import pallas as pl
from jax.experimental.pallas import tpu as pltpu

Protein_Max_Length = 256      # undefined global in the reference module; fixed here
PML = Protein_Max_Length
EPS = 1e-5
OUT_DIM = 9                   # 3x3 transform, flattened
OUT_PAD = 128                 # lane-dense padded output width
TARGET_ROWS = 2048            # target MXU M rows (TILE_B * chunk_N) per grid step


def _round_up(x, m):
    return ((x + m - 1) // m) * m


def _bf16_epilogue_ok():
    """bf16 VALU exists on v6e / v7x; keep f32 epilogues elsewhere (v4/v5e)."""
    try:
        kind = jax.devices()[0].device_kind.lower()
    except Exception:
        return False
    return ("v6" in kind) or ("v7" in kind) or ("tpu7" in kind)


# -----------------------------------------------------------------------------
# Kernel (closure over the static tiling plan)
# -----------------------------------------------------------------------------
def _make_kernel(n_actual, chunk_n, num_chunks, bf16_epilogue):

    def kernel(x_ref,
               w1_ref, t1_ref, w2_ref, t2_ref, w3_ref, t3_ref,
               fw1_ref, ft1_ref, fw2_ref, ft2_ref, fw3_ref, c3_ref,
               out_ref, vmax_ref):
        k = pl.program_id(1)
        tb, cn, c = x_ref.shape
        x = x_ref[...].reshape(tb * cn, c)                         # bf16 (tb*cn, C)

        def epilogue(h, t_ref):
            if bf16_epilogue:                                      # v6e/v7x: packed bf16 VALU
                return jnp.maximum(h.astype(jnp.bfloat16)
                                   + t_ref[...].astype(jnp.bfloat16), 0)
            return jnp.maximum(h + t_ref[...], 0.0).astype(jnp.bfloat16)

        # conv1 / conv2 (1x1) + folded-BN shift + relu; conv3 is matmul only
        h = jnp.dot(x, w1_ref[...], preferred_element_type=jnp.float32)
        h = epilogue(h, t1_ref)                                    # (tb*cn, 64)
        h = jnp.dot(h, w2_ref[...], preferred_element_type=jnp.float32)
        h = epilogue(h, t2_ref)                                    # (tb*cn, 128)
        h = jnp.dot(h, w3_ref[...], preferred_element_type=jnp.float32)
        h = h.reshape(tb, cn, PML)                                 # (tb, cn, PML) f32

        # mask padded points (only traced if N was padded to a chunk multiple)
        if num_chunks * chunk_n != n_actual:
            pt = k * chunk_n + jax.lax.broadcasted_iota(jnp.int32, h.shape, 1)
            h = jnp.where(pt < n_actual, h, -jnp.inf)

        chunk_max = jnp.max(h, axis=1)                             # (tb, PML)

        @pl.when(k == 0)
        def _():
            vmax_ref[...] = jnp.full(vmax_ref.shape, -jnp.inf, vmax_ref.dtype)

        vmax_ref[...] = jnp.maximum(vmax_ref[...], chunk_max)

        @pl.when(k == num_chunks - 1)
        def _():
            # conv3 bias + relu hoisted after the max-pool (exact reorder)
            v = jnp.maximum(vmax_ref[...] + t3_ref[...], 0.0)      # (tb, PML)
            g = jnp.dot(v.astype(jnp.bfloat16), fw1_ref[...],
                        preferred_element_type=jnp.float32)
            g = jnp.maximum(g + ft1_ref[...], 0.0)                 # (tb, 512)
            g = jnp.dot(g.astype(jnp.bfloat16), fw2_ref[...],
                        preferred_element_type=jnp.float32)
            g = jnp.maximum(g + ft2_ref[...], 0.0)                 # (tb, 256)
            o = jnp.dot(g.astype(jnp.bfloat16), fw3_ref[...],
                        preferred_element_type=jnp.float32)        # (tb, OUT_PAD)
            out_ref[0] = o + c3_ref[...]

    return kernel


# -----------------------------------------------------------------------------
# Host-side parameter folding (eval-mode BN -> weights / shifts)
# -----------------------------------------------------------------------------
def fold_params(p, mm_dtype=jnp.bfloat16):
    """Return the flat arg list [w1,t1,w2,t2,w3,t3,fw1,ft1,fw2,ft2,fw3p,c3p]."""
    def fold(w, b, bn):
        s = bn["gamma"] / jnp.sqrt(bn["var"] + EPS)                 # (Cout,)
        w_f = (w * s[None, :]).astype(mm_dtype)                     # scale into W
        t = ((b - bn["mean"]) * s + bn["beta"]).reshape(1, -1)
        return w_f, t.astype(jnp.float32)

    w1, t1 = fold(p["w1"], p["b1"], p["bn1"])
    w2, t2 = fold(p["w2"], p["b2"], p["bn2"])
    w3, t3 = fold(p["w3"], p["b3"], p["bn3"])
    fw1, ft1 = fold(p["fw1"], p["fb1"], p["bn4"])
    fw2, ft2 = fold(p["fw2"], p["fb2"], p["bn5"])

    iden = jnp.array([1, 0, 0, 0, 1, 0, 0, 0, 1], jnp.float32)
    # pad fc3 to OUT_PAD output columns -> lane-dense store, slice later
    fw3p = jnp.zeros((p["fw3"].shape[0], OUT_PAD), jnp.float32)
    fw3p = fw3p.at[:, :OUT_DIM].set(p["fw3"]).astype(mm_dtype)
    c3p = jnp.zeros((1, OUT_PAD), jnp.float32)
    c3p = c3p.at[0, :OUT_DIM].set(p["fb3"] + iden)

    return [w1, t1, w2, t2, w3, t3, fw1, ft1, fw2, ft2, fw3p, c3p]


# -----------------------------------------------------------------------------
# Tiling plan
# -----------------------------------------------------------------------------
def _plan_tiles(B, N):
    b8 = _round_up(max(B, 1), 8)
    if N * 8 > TARGET_ROWS:
        # large point count: chunk the point axis, keep a decent fc M (TILE_B)
        tb = min(b8, 64)
        cn = max(16, _round_up(max(TARGET_ROWS // tb, 16), 16))
        cn = min(cn, _round_up(N, 16))
        n_pad = _round_up(N, cn)
    else:
        tb = min(b8, max(8, _round_up(max(TARGET_ROWS // max(N, 1), 1), 8)))
        cn, n_pad = N, N
    # keep >=2 batch tiles when the batch allows (v7x megacore split)
    if _round_up(B, tb) // tb < 2 and tb >= 16:
        tb = _round_up((tb + 1) // 2, 8)
    b_pad = _round_up(B, tb)
    return tb, b_pad, cn, n_pad


# -----------------------------------------------------------------------------
# Pallas wrapper
# -----------------------------------------------------------------------------
@functools.partial(jax.jit, static_argnames=("bf16_epilogue",))
def _stn3d_pallas(x_ncl, folded, bf16_epilogue):
    B, C, N = x_ncl.shape
    x = jnp.transpose(x_ncl, (0, 2, 1)).astype(jnp.bfloat16)        # (B, N, C)

    tile_b, b_pad, chunk_n, n_pad = _plan_tiles(B, N)
    if (b_pad, n_pad) != (B, N):
        x = jnp.pad(x, ((0, b_pad - B), (0, n_pad - N), (0, 0)))
    num_tiles_b = b_pad // tile_b
    num_chunks = n_pad // chunk_n

    kernel = _make_kernel(N, chunk_n, num_chunks, bf16_epilogue)

    in_specs = [pl.BlockSpec((tile_b, chunk_n, C), lambda i, k: (i, k, 0))]
    in_specs += [pl.BlockSpec(a.shape, lambda i, k, nd=a.ndim: (0,) * nd)
                 for a in folded]

    # rough VMEM need: conv-chain slab + 2x weights + scratch + out block
    rows = tile_b * chunk_n
    weight_bytes = sum(int(a.size) * a.dtype.itemsize for a in folded)
    est = rows * 2200 + 2 * weight_bytes + tile_b * PML * 4 + tile_b * OUT_PAD * 4
    vmem_limit = int(min(48 << 20, max(32 << 20, 4 * est)))         # v7x-safe cap

    flops = (2 * b_pad * n_pad * (C * 64 + 64 * 128 + 128 * PML)
             + 2 * b_pad * (PML * 512 + 512 * 256 + 256 * OUT_PAD))
    bytes_accessed = int(x.size * 2 + weight_bytes
                         + num_tiles_b * tile_b * OUT_PAD * 4)

    out = pl.pallas_call(
        kernel,
        out_shape=jax.ShapeDtypeStruct((num_tiles_b, tile_b, OUT_PAD), jnp.float32),
        grid=(num_tiles_b, num_chunks),
        in_specs=in_specs,
        out_specs=pl.BlockSpec((1, tile_b, OUT_PAD), lambda i, k: (i, 0, 0)),
        scratch_shapes=[pltpu.VMEM((tile_b, PML), jnp.float32)],
        compiler_params=pltpu.CompilerParams(
            dimension_semantics=("parallel", "arbitrary"),
            vmem_limit_bytes=vmem_limit),
        cost_estimate=pl.CostEstimate(flops=flops, transcendentals=0,
                                      bytes_accessed=bytes_accessed),
    )(x, *folded)

    out = out.reshape(b_pad, OUT_PAD)[:B, :OUT_DIM]
    return out.reshape(-1, 3, 3)


def stn3d_forward(x_ncl, folded):
    return _stn3d_pallas(x_ncl, tuple(folded), _bf16_epilogue_ok())


# -----------------------------------------------------------------------------
# Parameter construction + pure-JAX references
# -----------------------------------------------------------------------------
def make_params(key, channel):
    ks = jax.random.split(key, 17)

    def nrm(k, shape, scale=0.1):
        return scale * jax.random.normal(k, shape, dtype=jnp.float32)

    def bn(k, c):
        k1, k2, k3, k4 = jax.random.split(k, 4)
        return dict(gamma=1.0 + 0.1 * jax.random.normal(k1, (c,), jnp.float32),
                    beta=0.1 * jax.random.normal(k2, (c,), jnp.float32),
                    mean=0.1 * jax.random.normal(k3, (c,), jnp.float32),
                    var=0.5 + jax.random.uniform(k4, (c,), jnp.float32))

    p = {}
    p["w1"], p["b1"] = nrm(ks[0], (channel, 64)), nrm(ks[1], (64,))
    p["w2"], p["b2"] = nrm(ks[2], (64, 128)), nrm(ks[3], (128,))
    p["w3"], p["b3"] = nrm(ks[4], (128, PML)), nrm(ks[5], (PML,))
    p["fw1"], p["fb1"] = nrm(ks[6], (PML, 512)), nrm(ks[7], (512,))
    p["fw2"], p["fb2"] = nrm(ks[8], (512, 256)), nrm(ks[9], (256,))
    p["fw3"], p["fb3"] = nrm(ks[10], (256, OUT_DIM)), nrm(ks[11], (OUT_DIM,))
    p["bn1"] = bn(ks[12], 64)
    p["bn2"] = bn(ks[13], 128)
    p["bn3"] = bn(ks[14], PML)
    p["bn4"] = bn(ks[15], 512)
    p["bn5"] = bn(ks[16], 256)
    return p


def ref_torch(x_ncl, p):
    """PyTorch-faithful forward (eval-mode BN, unfolded), full float32."""
    hi = jax.lax.Precision.HIGHEST
    x = jnp.transpose(x_ncl, (0, 2, 1))

    def bn_apply(y, bn):
        return (y - bn["mean"]) / jnp.sqrt(bn["var"] + EPS) * bn["gamma"] + bn["beta"]

    h = jax.nn.relu(bn_apply(jnp.dot(x, p["w1"], precision=hi) + p["b1"], p["bn1"]))
    h = jax.nn.relu(bn_apply(jnp.dot(h, p["w2"], precision=hi) + p["b2"], p["bn2"]))
    h = jax.nn.relu(bn_apply(jnp.dot(h, p["w3"], precision=hi) + p["b3"], p["bn3"]))
    v = jnp.max(h, axis=1)
    g = jax.nn.relu(bn_apply(jnp.dot(v, p["fw1"], precision=hi) + p["fb1"], p["bn4"]))
    g = jax.nn.relu(bn_apply(jnp.dot(g, p["fw2"], precision=hi) + p["fb2"], p["bn5"]))
    o = jnp.dot(g, p["fw3"], precision=hi) + p["fb3"]
    iden = jnp.array([1, 0, 0, 0, 1, 0, 0, 0, 1], jnp.float32)
    return (o + iden).reshape(-1, 3, 3)


def folded_forward_ref(x_ncl, fp, mm_dtype, bf16_epilogue=False):
    """Pure-JAX forward mirroring the kernel math (folded params, same dtypes,
    conv3 bias+relu hoisted after the max-pool)."""
    w1, t1, w2, t2, w3, t3, fw1, ft1, fw2, ft2, fw3p, c3p = fp
    hi = jax.lax.Precision.HIGHEST

    def mm(a, w):
        return jnp.dot(a.astype(mm_dtype), w,
                       preferred_element_type=jnp.float32, precision=hi)

    def epi(h, t):
        if bf16_epilogue:
            return jnp.maximum(h.astype(jnp.bfloat16) + t.astype(jnp.bfloat16), 0)
        return jnp.maximum(h + t, 0.0)

    x = jnp.transpose(x_ncl, (0, 2, 1))
    h = epi(mm(x, w1), t1)
    h = epi(mm(h, w2), t2)
    h = mm(h, w3)
    v = jnp.max(h, axis=1)
    v = jnp.maximum(v + t3, 0.0)
    g = jnp.maximum(mm(v, fw1) + ft1, 0.0)
    g = jnp.maximum(mm(g, fw2) + ft2, 0.0)
    o = mm(g, fw3p) + c3p
    return o[:, :OUT_DIM].reshape(-1, 3, 3)


if __name__ == "__main__":
    B, channel, N = 2, 4, 16
    key = jax.random.PRNGKey(0)
    kx, kp = jax.random.split(key)
    x = jax.random.normal(kx, (B, channel, N), dtype=jnp.float32)   # NCL like PyTorch
    params = make_params(kp, channel)

    folded_bf16 = fold_params(params, jnp.bfloat16)
    bf16_epi = _bf16_epilogue_ok()

    out = stn3d_forward(x, folded_bf16)
    out = jax.block_until_ready(out)
    assert out.shape == (B, 3, 3), out.shape

    # 1) validate BN-fold + hoisted conv3 bias/relu reorder (pure JAX, f32 vs f32)
    ref_t = ref_torch(x, params)
    ref_fold32 = folded_forward_ref(x, fold_params(params, jnp.float32),
                                    jnp.float32, bf16_epilogue=False)
    assert jnp.allclose(ref_t, ref_fold32, atol=1e-4, rtol=1e-4), (
        f"fold mismatch {jnp.max(jnp.abs(ref_t - ref_fold32))}")

    # 2) validate the Pallas kernel against a precision-matched JAX reference
    ref_bf16 = folded_forward_ref(x, folded_bf16, jnp.bfloat16,
                                  bf16_epilogue=bf16_epi)
    assert jnp.allclose(out, ref_bf16, atol=1e-2, rtol=1e-2), (
        f"kernel mismatch {jnp.max(jnp.abs(out - ref_bf16))}")

    print("KERNEL_OK")
</pallas_src>

<mosaic_0001>
module attributes {stable_mosaic.version = 11 : i64} {
  func.func @kernel(%arg0: i32, %arg1: i32, %arg2: memref<8x16x4xbf16, #tpu.memory_space<vmem>>, %arg3: memref<4x64xbf16, #tpu.memory_space<vmem>>, %arg4: memref<1x64xf32, #tpu.memory_space<vmem>>, %arg5: memref<64x128xbf16, #tpu.memory_space<vmem>>, %arg6: memref<1x128xf32, #tpu.memory_space<vmem>>, %arg7: memref<128x256xbf16, #tpu.memory_space<vmem>>, %arg8: memref<1x256xf32, #tpu.memory_space<vmem>>, %arg9: memref<256x512xbf16, #tpu.memory_space<vmem>>, %arg10: memref<1x512xf32, #tpu.memory_space<vmem>>, %arg11: memref<512x256xbf16, #tpu.memory_space<vmem>>, %arg12: memref<1x256xf32, #tpu.memory_space<vmem>>, %arg13: memref<256x128xbf16, #tpu.memory_space<vmem>>, %arg14: memref<1x128xf32, #tpu.memory_space<vmem>>, %arg15: memref<1x8x128xf32, #tpu.memory_space<vmem>>, %arg16: memref<8x256xf32, #tpu.memory_space<vmem>>) attributes {dimension_semantics = [#tpu.dimension_semantics<parallel>, #tpu.dimension_semantics<arbitrary>], iteration_bounds = array<i64: 1, 1>, scalar_prefetch = 0 : i64, scratch_operands = 1 : i64, tpu.core_type = #tpu.core_type<tc>, window_params = [{transform_indices = @transform_0, window_bounds = array<i64: 8, 16, 4>}, {pipeline_mode = #tpu.pipeline_mode<synchronous>, transform_indices = @transform_1, window_bounds = array<i64: 4, 64>}, {pipeline_mode = #tpu.pipeline_mode<synchronous>, transform_indices = @transform_2, window_bounds = array<i64: 1, 64>}, {pipeline_mode = #tpu.pipeline_mode<synchronous>, transform_indices = @transform_3, window_bounds = array<i64: 64, 128>}, {pipeline_mode = #tpu.pipeline_mode<synchronous>, transform_indices = @transform_4, window_bounds = array<i64: 1, 128>}, {pipeline_mode = #tpu.pipeline_mode<synchronous>, transform_indices = @transform_5, window_bounds = array<i64: 128, 256>}, {pipeline_mode = #tpu.pipeline_mode<synchronous>, transform_indices = @transform_6, window_bounds = array<i64: 1, 256>}, {pipeline_mode = #tpu.pipeline_mode<synchronous>, transform_indices = @transform_7, window_bounds = array<i64: 256, 512>}, {pipeline_mode = #tpu.pipeline_mode<synchronous>, transform_indices = @transform_8, window_bounds = array<i64: 1, 512>}, {pipeline_mode = #tpu.pipeline_mode<synchronous>, transform_indices = @transform_9, window_bounds = array<i64: 512, 256>}, {pipeline_mode = #tpu.pipeline_mode<synchronous>, transform_indices = @transform_10, window_bounds = array<i64: 1, 256>}, {pipeline_mode = #tpu.pipeline_mode<synchronous>, transform_indices = @transform_11, window_bounds = array<i64: 256, 128>}, {pipeline_mode = #tpu.pipeline_mode<synchronous>, transform_indices = @transform_12, window_bounds = array<i64: 1, 128>}, {transform_indices = @transform_13, window_bounds = array<i64: 1, 8, 128>}]} {
    %c0 = arith.constant 0 : index
    %c0_0 = arith.constant 0 : index
    %c0_1 = arith.constant 0 : index
    %0 = vector.load %arg2[%c0, %c0_0, %c0_1] : memref<8x16x4xbf16, #tpu.memory_space<vmem>>, vector<8x16x4xbf16>
    %1 = vector.shape_cast %0 : vector<8x16x4xbf16> to vector<128x4xbf16>
    %c0_2 = arith.constant 0 : index
    %c0_3 = arith.constant 0 : index
    %2 = vector.load %arg3[%c0_2, %c0_3] : memref<4x64xbf16, #tpu.memory_space<vmem>>, vector<4x64xbf16>
    %cst = arith.constant dense<0.000000e+00> : vector<128x64xf32>
    %3 = tpu.matmul %1, %2, %cst {dimension_numbers = #tpu.dot_dimension_numbers<[1], [0], [0], [1], [0, 0, 1, 1], [], []>} : vector<128x4xbf16>, vector<4x64xbf16>, vector<128x64xf32> -> vector<128x64xf32>
    %c0_4 = arith.constant 0 : index
    %c0_5 = arith.constant 0 : index
    %4 = vector.load %arg4[%c0_4, %c0_5] : memref<1x64xf32, #tpu.memory_space<vmem>>, vector<1x64xf32>
    %5 = vector.broadcast %4 : vector<1x64xf32> to vector<128x64xf32>
    %6 = arith.addf %3, %5 : vector<128x64xf32>
    %cst_6 = arith.constant 0.000000e+00 : f32
    %7 = vector.broadcast %cst_6 : f32 to vector<128x64xf32>
    %8 = arith.maximumf %6, %7 : vector<128x64xf32>
    %9 = arith.truncf %8 : vector<128x64xf32> to vector<128x64xbf16>
    %c0_7 = arith.constant 0 : index
    %c0_8 = arith.constant 0 : index
    %10 = vector.load %arg5[%c0_7, %c0_8] : memref<64x128xbf16, #tpu.memory_space<vmem>>, vector<64x128xbf16>
    %cst_9 = arith.constant dense<0.000000e+00> : vector<128x128xf32>
    %11 = tpu.matmul %9, %10, %cst_9 {dimension_numbers = #tpu.dot_dimension_numbers<[1], [0], [0], [1], [0, 0, 1, 1], [], []>} : vector<128x64xbf16>, vector<64x128xbf16>, vector<128x128xf32> -> vector<128x128xf32>
    %c0_10 = arith.constant 0 : index
    %c0_11 = arith.constant 0 : index
    %12 = vector.load %arg6[%c0_10, %c0_11] : memref<1x128xf32, #tpu.memory_space<vmem>>, vector<1x128xf32>
    %13 = vector.broadcast %12 : vector<1x128xf32> to vector<128x128xf32>
    %14 = arith.addf %11, %13 : vector<128x128xf32>
    %cst_12 = arith.constant 0.000000e+00 : f32
    %15 = vector.broadcast %cst_12 : f32 to vector<128x128xf32>
    %16 = arith.maximumf %14, %15 : vector<128x128xf32>
    %17 = arith.truncf %16 : vector<128x128xf32> to vector<128x128xbf16>
    %c0_13 = arith.constant 0 : index
    %c0_14 = arith.constant 0 : index
    %18 = vector.load %arg7[%c0_13, %c0_14] : memref<128x256xbf16, #tpu.memory_space<vmem>>, vector<128x256xbf16>
    %cst_15 = arith.constant dense<0.000000e+00> : vector<128x256xf32>
    %19 = tpu.matmul %17, %18, %cst_15 {dimension_numbers = #tpu.dot_dimension_numbers<[1], [0], [0], [1], [0, 0, 1, 1], [], []>} : vector<128x128xbf16>, vector<128x256xbf16>, vector<128x256xf32> -> vector<128x256xf32>
    %20 = vector.shape_cast %19 : vector<128x256xf32> to vector<8x16x256xf32>
    %cst_16 = arith.constant dense<0xFF800000> : vector<8x256xf32>
    %21 = vector.multi_reduction <maximumf>, %20, %cst_16 [1] : vector<8x16x256xf32> to vector<8x256xf32>
    %c0_i32 = arith.constant 0 : i32
    %22 = arith.cmpi eq, %arg1, %c0_i32 : i32
    %23 = arith.extui %22 : i1 to i32
    %c0_i32_17 = arith.constant 0 : i32
    %24 = arith.cmpi ne, %23, %c0_i32_17 : i32
    scf.if %24 {
      %cst_24 = arith.constant 0xFF800000 : f32
      %31 = vector.broadcast %cst_24 : f32 to vector<8x256xf32>
      %c0_25 = arith.constant 0 : index
      %c0_26 = arith.constant 0 : index
      %32 = vector.load %arg16[%c0_25, %c0_26] : memref<8x256xf32, #tpu.memory_space<vmem>>, vector<8x256xf32>
      tpu.vector_store %arg16[%c0_25, %c0_26], %31 {strides = array<i32>} : memref<8x256xf32, #tpu.memory_space<vmem>>, vector<8x256xf32>,
    } else {
    }
    %c0_18 = arith.constant 0 : index
    %c0_19 = arith.constant 0 : index
    %25 = vector.load %arg16[%c0_18, %c0_19] : memref<8x256xf32, #tpu.memory_space<vmem>>, vector<8x256xf32>
    %26 = arith.maximumf %25, %21 : vector<8x256xf32>
    %c0_20 = arith.constant 0 : index
    %c0_21 = arith.constant 0 : index
    %27 = vector.load %arg16[%c0_20, %c0_21] : memref<8x256xf32, #tpu.memory_space<vmem>>, vector<8x256xf32>
    tpu.vector_store %arg16[%c0_20, %c0_21], %26 {strides = array<i32>} : memref<8x256xf32, #tpu.memory_space<vmem>>, vector<8x256xf32>,
    %c0_i32_22 = arith.constant 0 : i32
    %28 = arith.cmpi eq, %arg1, %c0_i32_22 : i32
    %29 = arith.extui %28 : i1 to i32
    %c0_i32_23 = arith.constant 0 : i32
    %30 = arith.cmpi ne, %29, %c0_i32_23 : i32
    scf.if %30 {
      %c0_24 = arith.constant 0 : index
      %c0_25 = arith.constant 0 : index
      %31 = vector.load %arg16[%c0_24, %c0_25] : memref<8x256xf32, #tpu.memory_space<vmem>>, vector<8x256xf32>
      %c0_26 = arith.constant 0 : index
      %c0_27 = arith.constant 0 : index
      %32 = vector.load %arg8[%c0_26, %c0_27] : memref<1x256xf32, #tpu.memory_space<vmem>>, vector<1x256xf32>
      %33 = vector.broadcast %32 : vector<1x256xf32> to vector<8x256xf32>
      %34 = arith.addf %31, %33 : vector<8x256xf32>
      %cst_28 = arith.constant 0.000000e+00 : f32
      %35 = vector.broadcast %cst_28 : f32 to vector<8x256xf32>
      %36 = arith.maximumf %34, %35 : vector<8x256xf32>
      %37 = arith.truncf %36 : vector<8x256xf32> to vector<8x256xbf16>
      %c0_29 = arith.constant 0 : index
      %c0_30 = arith.constant 0 : index
      %38 = vector.load %arg9[%c0_29, %c0_30] : memref<256x512xbf16, #tpu.memory_space<vmem>>, vector<256x512xbf16>
      %cst_31 = arith.constant dense<0.000000e+00> : vector<8x512xf32>
      %39 = tpu.matmul %37, %38, %cst_31 {dimension_numbers = #tpu.dot_dimension_numbers<[1], [0], [0], [1], [0, 0, 1, 1], [], []>} : vector<8x256xbf16>, vector<256x512xbf16>, vector<8x512xf32> -> vector<8x512xf32>
      %c0_32 = arith.constant 0 : index
      %c0_33 = arith.constant 0 : index
      %40 = vector.load %arg10[%c0_32, %c0_33] : memref<1x512xf32, #tpu.memory_space<vmem>>, vector<1x512xf32>
      %41 = vector.broadcast %40 : vector<1x512xf32> to vector<8x512xf32>
      %42 = arith.addf %39, %41 : vector<8x512xf32>
      %cst_34 = arith.constant 0.000000e+00 : f32
      %43 = vector.broadcast %cst_34 : f32 to vector<8x512xf32>
      %44 = arith.maximumf %42, %43 : vector<8x512xf32>
      %45 = arith.truncf %44 : vector<8x512xf32> to vector<8x512xbf16>
      %c0_35 = arith.constant 0 : index
      %c0_36 = arith.constant 0 : index
      %46 = vector.load %arg11[%c0_35, %c0_36] : memref<512x256xbf16, #tpu.memory_space<vmem>>, vector<512x256xbf16>
      %cst_37 = arith.constant dense<0.000000e+00> : vector<8x256xf32>
      %47 = tpu.matmul %45, %46, %cst_37 {dimension_numbers = #tpu.dot_dimension_numbers<[1], [0], [0], [1], [0, 0, 1, 1], [], []>} : vector<8x512xbf16>, vector<512x256xbf16>, vector<8x256xf32> -> vector<8x256xf32>
      %c0_38 = arith.constant 0 : index
      %c0_39 = arith.constant 0 : index
      %48 = vector.load %arg12[%c0_38, %c0_39] : memref<1x256xf32, #tpu.memory_space<vmem>>, vector<1x256xf32>
      %49 = vector.broadcast %48 : vector<1x256xf32> to vector<8x256xf32>
      %50 = arith.addf %47, %49 : vector<8x256xf32>
      %cst_40 = arith.constant 0.000000e+00 : f32
      %51 = vector.broadcast %cst_40 : f32 to vector<8x256xf32>
      %52 = arith.maximumf %50, %51 : vector<8x256xf32>
      %53 = arith.truncf %52 : vector<8x256xf32> to vector<8x256xbf16>
      %c0_41 = arith.constant 0 : index
      %c0_42 = arith.constant 0 : index
      %54 = vector.load %arg13[%c0_41, %c0_42] : memref<256x128xbf16, #tpu.memory_space<vmem>>, vector<256x128xbf16>
      %cst_43 = arith.constant dense<0.000000e+00> : vector<8x128xf32>
      %55 = tpu.matmul %53, %54, %cst_43 {dimension_numbers = #tpu.dot_dimension_numbers<[1], [0], [0], [1], [0, 0, 1, 1], [], []>} : vector<8x256xbf16>, vector<256x128xbf16>, vector<8x128xf32> -> vector<8x128xf32>
      %c0_44 = arith.constant 0 : index
      %c0_45 = arith.constant 0 : index
      %56 = vector.load %arg14[%c0_44, %c0_45] : memref<1x128xf32, #tpu.memory_space<vmem>>, vector<1x128xf32>
      %57 = vector.broadcast %56 : vector<1x128xf32> to vector<8x128xf32>
      %58 = arith.addf %55, %57 : vector<8x128xf32>
      %c0_46 = arith.constant 0 : index
      %c0_47 = arith.constant 0 : index
      %c0_48 = arith.constant 0 : index
      %59 = vector.load %arg15[%c0_46, %c0_47, %c0_48] : memref<1x8x128xf32, #tpu.memory_space<vmem>>, vector<1x8x128xf32>
      %60 = vector.shape_cast %59 : vector<1x8x128xf32> to vector<8x128xf32>
      %61 = vector.shape_cast %58 : vector<8x128xf32> to vector<1x8x128xf32>
      tpu.vector_store %arg15[%c0_46, %c0_47, %c0_48], %61 {strides = array<i32>} : memref<1x8x128xf32, #tpu.memory_space<vmem>>, vector<1x8x128xf32>,
    } else {
    }
    return
  }
  func.func @transform_0(%arg0: i32, %arg1: i32) -> (i32, i32, i32) {
    %c0_i32 = arith.constant 0 : i32
    %c0_i32_0 = arith.constant 0 : i32
    return %arg0, %arg1, %c0_i32 : i32, i32, i32
  }
  func.func @transform_1(%arg0: i32, %arg1: i32) -> (i32, i32) {
    %c0_i32 = arith.constant 0 : i32
    %c0_i32_0 = arith.constant 0 : i32
    %c0_i32_1 = arith.constant 0 : i32
    return %c0_i32, %c0_i32_0 : i32, i32
  }
  func.func @transform_2(%arg0: i32, %arg1: i32) -> (i32, i32) {
    %c0_i32 = arith.constant 0 : i32
    %c0_i32_0 = arith.constant 0 : i32
    %c0_i32_1 = arith.constant 0 : i32
    return %c0_i32, %c0_i32_0 : i32, i32
  }
  func.func @transform_3(%arg0: i32, %arg1: i32) -> (i32, i32) {
    %c0_i32 = arith.constant 0 : i32
    %c0_i32_0 = arith.constant 0 : i32
    %c0_i32_1 = arith.constant 0 : i32
    return %c0_i32, %c0_i32_0 : i32, i32
  }
  func.func @transform_4(%arg0: i32, %arg1: i32) -> (i32, i32) {
    %c0_i32 = arith.constant 0 : i32
    %c0_i32_0 = arith.constant 0 : i32
    %c0_i32_1 = arith.constant 0 : i32
    return %c0_i32, %c0_i32_0 : i32, i32
  }
  func.func @transform_5(%arg0: i32, %arg1: i32) -> (i32, i32) {
    %c0_i32 = arith.constant 0 : i32
    %c0_i32_0 = arith.constant 0 : i32
    %c0_i32_1 = arith.constant 0 : i32
    return %c0_i32, %c0_i32_0 : i32, i32
  }
  func.func @transform_6(%arg0: i32, %arg1: i32) -> (i32, i32) {
    %c0_i32 = arith.constant 0 : i32
    %c0_i32_0 = arith.constant 0 : i32
    %c0_i32_1 = arith.constant 0 : i32
    return %c0_i32, %c0_i32_0 : i32, i32
  }
  func.func @transform_7(%arg0: i32, %arg1: i32) -> (i32, i32) {
    %c0_i32 = arith.constant 0 : i32
    %c0_i32_0 = arith.constant 0 : i32
    %c0_i32_1 = arith.constant 0 : i32
    return %c0_i32, %c0_i32_0 : i32, i32
  }
  func.func @transform_8(%arg0: i32, %arg1: i32) -> (i32, i32) {
    %c0_i32 = arith.constant 0 : i32
    %c0_i32_0 = arith.constant 0 : i32
    %c0_i32_1 = arith.constant 0 : i32
    return %c0_i32, %c0_i32_0 : i32, i32
  }
  func.func @transform_9(%arg0: i32, %arg1: i32) -> (i32, i32) {
    %c0_i32 = arith.constant 0 : i32
    %c0_i32_0 = arith.constant 0 : i32
    %c0_i32_1 = arith.constant 0 : i32
    return %c0_i32, %c0_i32_0 : i32, i32
  }
  func.func @transform_10(%arg0: i32, %arg1: i32) -> (i32, i32) {
    %c0_i32 = arith.constant 0 : i32
    %c0_i32_0 = arith.constant 0 : i32
    %c0_i32_1 = arith.constant 0 : i32
    return %c0_i32, %c0_i32_0 : i32, i32
  }
  func.func @transform_11(%arg0: i32, %arg1: i32) -> (i32, i32) {
    %c0_i32 = arith.constant 0 : i32
    %c0_i32_0 = arith.constant 0 : i32
    %c0_i32_1 = arith.constant 0 : i32
    return %c0_i32, %c0_i32_0 : i32, i32
  }
  func.func @transform_12(%arg0: i32, %arg1: i32) -> (i32, i32) {
    %c0_i32 = arith.constant 0 : i32
    %c0_i32_0 = arith.constant 0 : i32
    %c0_i32_1 = arith.constant 0 : i32
    return %c0_i32, %c0_i32_0 : i32, i32
  }
  func.func @transform_13(%arg0: i32, %arg1: i32) -> (i32, i32, i32) {
    %c0_i32 = arith.constant 0 : i32
    %c0_i32_0 = arith.constant 0 : i32
    %c0_i32_1 = arith.constant 0 : i32
    return %arg0, %c0_i32, %c0_i32_0 : i32, i32, i32
  }
}

</mosaic_0001>

<llo_original>
// kernel: _stn3d_pallas.1
$region0: #{_stn3d_pallas.1}
  #allocation0 [shape = 'u32[]', space=smem, size = 0x4, offset = 0x4, fixed_abs, tag = 'smem constant byte address 0x4 - core index']
  #allocation1 [shape = 'u32[144,128]{1,0:T(1,128)}', space=vmem, size = 0x12000, scoped, tag = 'internal scratch']
  #allocation2 [shape = 'f32[8,256]{1,0:T(8,128)}', space=vmem, size = 0x2000, scoped, tag = 'scratch operand']
  %s0 = inlined_call_operand.vmem [shape: bf16[8,16,4], index: 0, kind: input, shape index: {}]
  %s1 = inlined_call_operand.vmem [shape: bf16[4,64], index: 1, kind: input, shape index: {}]
  %s2 = inlined_call_operand.vmem [shape: f32[1,64], index: 2, kind: input, shape index: {}]
  %s3 = inlined_call_operand.hbm [shape: bf16[64,128], index: 3, kind: input, shape index: {}]
  %s4 = inlined_call_operand.hbm [shape: f32[1,128], index: 4, kind: input, shape index: {}]
  %s5 = inlined_call_operand.vmem [shape: bf16[128,256], index: 5, kind: input, shape index: {}]
  %s6 = inlined_call_operand.vmem [shape: f32[1,256], index: 6, kind: input, shape index: {}]
  %s7 = inlined_call_operand.hbm [shape: bf16[256,512], index: 7, kind: input, shape index: {}]
  %s8 = inlined_call_operand.vmem [shape: f32[1,512], index: 8, kind: input, shape index: {}]
  %s9 = inlined_call_operand.hbm [shape: bf16[512,256], index: 9, kind: input, shape index: {}]
  %s10 = inlined_call_operand.vmem [shape: f32[1,256], index: 10, kind: input, shape index: {}]
  %s11 = inlined_call_operand.hbm [shape: bf16[256,128], index: 11, kind: input, shape index: {}]
  %s12 = inlined_call_operand.vmem [shape: f32[1,128], index: 12, kind: input, shape index: {}]
  %s13 = inlined_call_operand.vmem [shape: f32[1,8,128], index: 13, kind: output, shape index: {}]
  %s14 = sld [smem:[#allocation0]]
  $region90: #{_stn3d_pallas.1} parent=0
    _
  %s16 = ssub.s32 1, %s14
  %s17 = scalar_select 0, %s16, %s14
  $region1: #{_stn3d_pallas.1} parent=0
    #allocation3 [shape = 'u8[16384]{0}', space=vmem, size = 0x4000, scoped, tag = 'input window, operand 3, single buffered']
    #allocation4 [shape = 's32[1]{0}', space=sflag, size = 0x4, scoped, tag = 'scoped memory for _stn3d_pallas.1']
    #allocation5 [shape = 'u8[512]{0}', space=vmem, size = 0x400, scoped, tag = 'input window, operand 4, single buffered']
    #allocation6 [shape = 's32[1]{0}', space=sflag, size = 0x4, scoped, tag = 'scoped memory for _stn3d_pallas.1']
    #allocation7 [shape = 'u8[262144]{0}', space=vmem, size = 0x40000, scoped, tag = 'input window, operand 7, single buffered']
    #allocation8 [shape = 'u8[262144]{0}', space=vmem, size = 0x40000, scoped, tag = 'input window, operand 9, single buffered']
    #allocation9 [shape = 's32[1]{0}', space=sflag, size = 0x4, scoped, tag = 'scoped memory for _stn3d_pallas.1']
    #allocation10 [shape = 'u8[65536]{0}', space=vmem, size = 0x10000, scoped, tag = 'input window, operand 11, single buffered']
    %18 = vsyncpa [#allocation4], 0
    %19 = vsyncpa [#allocation6], 0
    %20 = vsyncpa [#allocation9], 0
    // Predicated region
    $region2: #{_stn3d_pallas.1} parent=1 // pred_check
      _
    $region3: #{_stn3d_pallas.1} parent=1 // pred_check_branch
      %22 = sbr.rel (0) target = $region5
    $region4: #{_stn3d_pallas.1} parent=1 // pred_region
      _
    $region5: #{_stn3d_pallas.1} parent=1 // pred_fallthru
      _
    // Predicated region
    $region6: #{_stn3d_pallas.1} parent=1 // pred_check
      _
    $region7: #{_stn3d_pallas.1} parent=1 // pred_check_branch
      %24 = sbr.rel (0) target = $region9
    $region8: #{_stn3d_pallas.1} parent=1 // pred_region
      _
    $region9: #{_stn3d_pallas.1} parent=1 // pred_fallthru
      _
    // Predicated region
    $region10: #{_stn3d_pallas.1} parent=1 // pred_check
      _
    $region11: #{_stn3d_pallas.1} parent=1 // pred_check_branch
      %26 = sbr.rel (0) target = $region13
    $region12: #{_stn3d_pallas.1} parent=1 // pred_region
      _
    $region13: #{_stn3d_pallas.1} parent=1 // pred_fallthru
      _
    // Predicated region
    $region14: #{_stn3d_pallas.1} parent=1 // pred_check
      _
    $region15: #{_stn3d_pallas.1} parent=1 // pred_check_branch
      %28 = sbr.rel (0) target = $region17
    $region16: #{_stn3d_pallas.1} parent=1 // pred_region
      %s30 = ssub.s32 512, 512
      %31 = vsyncadd [#allocation4], %s30
      %s32 = sshll.u32 [#allocation3], 4
      %s33 = int_to_ptr.vmem [resolvable:$true] %s32
      %38 = dma.hbm_to_vmem [thread:$0]  %s3, 512, %s33, [#allocation4], 64, 64, 4
    $region17: #{_stn3d_pallas.1} parent=1 // pred_fallthru
      _
    // Predicated region
    $region18: #{_stn3d_pallas.1} parent=1 // pred_check
      _
    $region19: #{_stn3d_pallas.1} parent=1 // pred_check_branch
      %40 = sbr.rel (0) target = $region21
    $region20: #{_stn3d_pallas.1} parent=1 // pred_region
      %s42 = ssub.s32 16, 16
      %43 = vsyncadd [#allocation6], %s42
      %s45 = sshll.u32 [#allocation5], 4
      %s46 = int_to_ptr.vmem [resolvable:$true] %s45
      %48 = dma.hbm_to_vmem [thread:$0]  %s4, 16, %s46, [#allocation6]
    $region21: #{_stn3d_pallas.1} parent=1 // pred_fallthru
      _
    // Predicated region
    $region22: #{_stn3d_pallas.1} parent=1 // pred_check
      _
    $region23: #{_stn3d_pallas.1} parent=1 // pred_check_branch
      %50 = sbr.rel (0) target = $region25
    $region24: #{_stn3d_pallas.1} parent=1 // pred_region
      _
    $region25: #{_stn3d_pallas.1} parent=1 // pred_fallthru
      _
    // Predicated region
    $region26: #{_stn3d_pallas.1} parent=1 // pred_check
      _
    $region27: #{_stn3d_pallas.1} parent=1 // pred_check_branch
      %52 = sbr.rel (0) target = $region29
    $region28: #{_stn3d_pallas.1} parent=1 // pred_region
      _
    $region29: #{_stn3d_pallas.1} parent=1 // pred_fallthru
      _
    // Predicated region
    $region30: #{_stn3d_pallas.1} parent=1 // pred_check
      _
    $region31: #{_stn3d_pallas.1} parent=1 // pred_check_branch
      %54 = sbr.rel (0) target = $region33
    $region32: #{_stn3d_pallas.1} parent=1 // pred_region
      %s56 = ssub.s32 8192, 8192
      %57 = vsyncadd [#allocation6], %s56
      %s58 = sshll.u32 [#allocation7], 4
      %s59 = int_to_ptr.vmem [resolvable:$true] %s58
      %64 = dma.hbm_to_vmem [thread:$0]  %s7, 8192, %s59, [#allocation6], 256, 256, 16
    $region33: #{_stn3d_pallas.1} parent=1 // pred_fallthru
      _
    // Predicated region
    $region34: #{_stn3d_pallas.1} parent=1 // pred_check
      _
    $region35: #{_stn3d_pallas.1} parent=1 // pred_check_branch
      %66 = sbr.rel (0) target = $region37
    $region36: #{_stn3d_pallas.1} parent=1 // pred_region
      _
    $region37: #{_stn3d_pallas.1} parent=1 // pred_fallthru
      _
    // Predicated region
    $region38: #{_stn3d_pallas.1} parent=1 // pred_check
      _
    $region39: #{_stn3d_pallas.1} parent=1 // pred_check_branch
      %68 = sbr.rel (0) target = $region41
    $region40: #{_stn3d_pallas.1} parent=1 // pred_region
      %s70 = ssub.s32 8192, 8192
      %71 = vsyncadd [#allocation9], %s70
      %s72 = sshll.u32 [#allocation8], 4
      %s73 = int_to_ptr.vmem [resolvable:$true] %s72
      %78 = dma.hbm_to_vmem [thread:$0]  %s9, 8192, %s73, [#allocation9], 128, 128, 8
    $region41: #{_stn3d_pallas.1} parent=1 // pred_fallthru
      _
    // Predicated region
    $region42: #{_stn3d_pallas.1} parent=1 // pred_check
      _
    $region43: #{_stn3d_pallas.1} parent=1 // pred_check_branch
      %80 = sbr.rel (0) target = $region45
    $region44: #{_stn3d_pallas.1} parent=1 // pred_region
      _
    $region45: #{_stn3d_pallas.1} parent=1 // pred_fallthru
      _
    // Predicated region
    $region46: #{_stn3d_pallas.1} parent=1 // pred_check
      _
    $region47: #{_stn3d_pallas.1} parent=1 // pred_check_branch
      %82 = sbr.rel (0) target = $region49
    $region48: #{_stn3d_pallas.1} parent=1 // pred_region
      %s84 = ssub.s32 2048, 2048
      %85 = vsyncadd [#allocation9], %s84
      %s86 = sshll.u32 [#allocation10], 4
      %s87 = int_to_ptr.vmem [resolvable:$true] %s86
      %92 = dma.hbm_to_vmem [thread:$0]  %s11, 2048, %s87, [#allocation9], 64, 64, 4
    $region49: #{_stn3d_pallas.1} parent=1 // pred_fallthru
      _
    // Predicated region
    $region50: #{_stn3d_pallas.1} parent=1 // pred_check
      _
    $region51: #{_stn3d_pallas.1} parent=1 // pred_check_branch
      %94 = sbr.rel (0) target = $region53
    $region52: #{_stn3d_pallas.1} parent=1 // pred_region
      _
    $region53: #{_stn3d_pallas.1} parent=1 // pred_fallthru
      _
    // Predicated region
    $region54: #{_stn3d_pallas.1} parent=1 // pred_check
      _
    $region55: #{_stn3d_pallas.1} parent=1 // pred_check_branch
      %96 = sbr.rel (0) target = $region57
    $region56: #{_stn3d_pallas.1} parent=1 // pred_region
      %97 = dma.done [#allocation4], 512
    $region57: #{_stn3d_pallas.1} parent=1 // pred_fallthru
      _
    // Predicated region
    $region58: #{_stn3d_pallas.1} parent=1 // pred_check
      _
    $region59: #{_stn3d_pallas.1} parent=1 // pred_check_branch
      %99 = sbr.rel (0) target = $region61
    $region60: #{_stn3d_pallas.1} parent=1 // pred_region
      %100 = dma.done [#allocation6], 16
    $region61: #{_stn3d_pallas.1} parent=1 // pred_fallthru
      _
    // Predicated region
    $region62: #{_stn3d_pallas.1} parent=1 // pred_check
      _
    $region63: #{_stn3d_pallas.1} parent=1 // pred_check_branch
      %102 = sbr.rel (0) target = $region65
    $region64: #{_stn3d_pallas.1} parent=1 // pred_region
      %103 = dma.done [#allocation6], 8192
    $region65: #{_stn3d_pallas.1} parent=1 // pred_fallthru
      _
    // Predicated region
    $region66: #{_stn3d_pallas.1} parent=1 // pred_check
      _
    $region67: #{_stn3d_pallas.1} parent=1 // pred_check_branch
      %105 = sbr.rel (0) target = $region69
    $region68: #{_stn3d_pallas.1} parent=1 // pred_region
      %106 = dma.done [#allocation9], 8192
    $region69: #{_stn3d_pallas.1} parent=1 // pred_fallthru
      _
    // Predicated region
    $region70: #{_stn3d_pallas.1} parent=1 // pred_check
      _
    $region71: #{_stn3d_pallas.1} parent=1 // pred_check_branch
      %108 = sbr.rel (0) target = $region73
    $region72: #{_stn3d_pallas.1} parent=1 // pred_region
      %109 = dma.done [#allocation9], 2048
    $region73: #{_stn3d_pallas.1} parent=1 // pred_fallthru
      _
    %v111 = vld [vmem:[%s0] sm:$0xf]
    %v112 = vld [vmem:[%s0 + $0x4] sm:$0xf]
    %v113 = vld [vmem:[%s0 + $0x8] sm:$0xf]
    %v114 = vld [vmem:[%s0 + $0xc] sm:$0xf]
    %v115 = vld [vmem:[%s0 + $0x10] sm:$0xf]
    %v116 = vld [vmem:[%s0 + $0x14] sm:$0xf]
    %v117 = vld [vmem:[%s0 + $0x18] sm:$0xf]
    %v118 = vld [vmem:[%s0 + $0x1c] sm:$0xf]
    %v119 = vld [vmem:[%s0 + $0x20] sm:$0xf]
    %v120 = vld [vmem:[%s0 + $0x24] sm:$0xf]
    %v121 = vld [vmem:[%s0 + $0x28] sm:$0xf]
    %v122 = vld [vmem:[%s0 + $0x2c] sm:$0xf]
    %v123 = vld [vmem:[%s0 + $0x30] sm:$0xf]
    %v124 = vld [vmem:[%s0 + $0x34] sm:$0xf]
    %v125 = vld [vmem:[%s0 + $0x38] sm:$0xf]
    %v126 = vld [vmem:[%s0 + $0x3c] sm:$0xf]
    %v127 = vld [vmem:[%s1] sm:$0x3]
    %v128 = vld [vmem:[%s2] sm:$0x1]
    %v130 = vlaneseq
    %v131 = vshrl.u32 %v130, 7
    %v132 = vsub.s32 0, %v131
    %v133 = vrot.slane %v128, %v132
    %v151 = vunpack.c.l.b16 %v111
    %v152 = vunpack.c.l.b16 %v112
    %v153 = vunpack.c.l.b16 %v113
    %v154 = vunpack.c.l.b16 %v114
    %v155 = vunpack.c.l.b16 %v115
    %v156 = vunpack.c.l.b16 %v116
    %v157 = vunpack.c.l.b16 %v117
    %v158 = vunpack.c.l.b16 %v118
    %v159 = vunpack.c.l.b16 %v119
    %v160 = vunpack.c.l.b16 %v120
    %v161 = vunpack.c.l.b16 %v121
    %v162 = vunpack.c.l.b16 %v122
    %v163 = vunpack.c.l.b16 %v123
    %v164 = vunpack.c.l.b16 %v124
    %v165 = vunpack.c.l.b16 %v125
    %v166 = vunpack.c.l.b16 %v126
    %v167 = vpack.c.b16 %v152, %v151
    %v168 = vpack.c.b16 %v154, %v153
    %v169 = vpack.c.b16 %v156, %v155
    %v170 = vpack.c.b16 %v158, %v157
    %v171 = vpack.c.b16 %v160, %v159
    %v172 = vpack.c.b16 %v162, %v161
    %v173 = vpack.c.b16 %v164, %v163
    %v174 = vpack.c.b16 %v166, %v165
    %vm175 = vcmask 31744
    %v177 = vsel %vm175, %v167, 0
    %v180 = vsel %vm175, %v168, 0
    %v183 = vsel %vm175, %v169, 0
    %v186 = vsel %vm175, %v170, 0
    %v189 = vsel %vm175, %v171, 0
    %v192 = vsel %vm175, %v172, 0
    %v195 = vsel %vm175, %v173, 0
    %v198 = vsel %vm175, %v174, 0
    %vm200 = vcmask 1041408
    %v202 = vsel %vm200, %v127, 0
    %204 = vmatprep.subr.bf16.mxu0 0
    %205 = vmatpush1.bf16.msra.mxu0 %v202
    %206 = vmatprep.subr.bf16.mxu0 0
    %207 = vmatpush1.bf16.msra.mxu0 0
    %208 = vmatprep.subr.bf16.mxu0 0
    %209 = vmatpush1.bf16.msra.mxu0 0
    %210 = vmatprep.subr.bf16.mxu0 0
    %211 = vmatpush1.bf16.msra.mxu0 0
    %212 = vmatprep.subr.bf16.mxu0 0
    %213 = vmatpush1.bf16.msra.mxu0 0
    %214 = vmatprep.subr.bf16.mxu0 0
    %215 = vmatpush1.bf16.msra.mxu0 0
    %216 = vmatprep.subr.bf16.mxu0 0
    %217 = vmatpush1.bf16.msra.mxu0 0
    %218 = vmatprep.subr.bf16.mxu0 0
    %219 = vmatpush1.bf16.msra.mxu0 0
    %220 = vmatprep.subr.bf16.mxu0 0
    %221 = vmatpush1.bf16.msra.mxu0 0
    %222 = vmatprep.subr.bf16.mxu0 0
    %223 = vmatpush1.bf16.msra.mxu0 0
    %224 = vmatprep.subr.bf16.mxu0 0
    %225 = vmatpush1.bf16.msra.mxu0 0
    %226 = vmatprep.subr.bf16.mxu0 0
    %227 = vmatpush1.bf16.msra.mxu0 0
    %228 = vmatprep.subr.bf16.mxu0 0
    %229 = vmatpush1.bf16.msra.mxu0 0
    %230 = vmatprep.subr.bf16.mxu0 0
    %231 = vmatpush1.bf16.msra.mxu0 0
    %232 = vmatprep.subr.bf16.mxu0 0
    %233 = vmatpush1.bf16.msra.mxu0 0
    %234 = vmatprep.subr.bf16.mxu0 0
    %235 = vmatpush1.bf16.msra.mxu0 0
    %236 = vmatprep.mubr.bf16.mxu0 0
    %237 = vmatmul.mubr.bf16.gmra.mrb[0].mxu0 %v177
    %v238 = vpop.f32.mrb[0].mxu0
    %v239 = vadd.f32 %v133, %v238
    %v240 = vpop.f32.mrb[0].mxu0
    %v241 = vpop.f32.mrb[0].mxu0
    %v242 = vadd.f32 %v133, %v241
    %v243 = vpop.f32.mrb[0].mxu0
    %244 = vmatprep.mubr.bf16.mxu0 0
    %245 = vmatmul.mubr.bf16.gmra.mrb[0].mxu0 %v180
    %v246 = vpop.f32.mrb[0].mxu0
    %v247 = vadd.f32 %v133, %v246
    %v248 = vpop.f32.mrb[0].mxu0
    %v249 = vpop.f32.mrb[0].mxu0
    %v250 = vadd.f32 %v133, %v249
    %v251 = vpop.f32.mrb[0].mxu0
    %252 = vmatprep.mubr.bf16.mxu0 0
    %253 = vmatmul.mubr.bf16.gmra.mrb[0].mxu0 %v183
    %v254 = vpop.f32.mrb[0].mxu0
    %v255 = vadd.f32 %v133, %v254
    %v256 = vpop.f32.mrb[0].mxu0
    %v257 = vpop.f32.mrb[0].mxu0
    %v258 = vadd.f32 %v133, %v257
    %v259 = vpop.f32.mrb[0].mxu0
    %260 = vmatprep.mubr.bf16.mxu0 0
    %261 = vmatmul.mubr.bf16.gmra.mrb[0].mxu0 %v186
    %v262 = vpop.f32.mrb[0].mxu0
    %v263 = vadd.f32 %v133, %v262
    %v264 = vpop.f32.mrb[0].mxu0
    %v265 = vpop.f32.mrb[0].mxu0
    %v266 = vadd.f32 %v133, %v265
    %v267 = vpop.f32.mrb[0].mxu0
    %268 = vmatprep.mubr.bf16.mxu0 0
    %269 = vmatmul.mubr.bf16.gmra.mrb[0].mxu0 %v189
    %v270 = vpop.f32.mrb[0].mxu0
    %v271 = vadd.f32 %v133, %v270
    %v272 = vpop.f32.mrb[0].mxu0
    %v273 = vpop.f32.mrb[0].mxu0
    %v274 = vadd.f32 %v133, %v273
    %v275 = vpop.f32.mrb[0].mxu0
    %276 = vmatprep.mubr.bf16.mxu0 0
    %277 = vmatmul.mubr.bf16.gmra.mrb[0].mxu0 %v192
    %v278 = vpop.f32.mrb[0].mxu0
    %v279 = vadd.f32 %v133, %v278
    %v280 = vpop.f32.mrb[0].mxu0
    %v281 = vpop.f32.mrb[0].mxu0
    %v282 = vadd.f32 %v133, %v281
    %v283 = vpop.f32.mrb[0].mxu0
    %284 = vmatprep.mubr.bf16.mxu0 0
    %285 = vmatmul.mubr.bf16.gmra.mrb[0].mxu0 %v195
    %v286 = vpop.f32.mrb[0].mxu0
    %v287 = vadd.f32 %v133, %v286
    %v288 = vpop.f32.mrb[0].mxu0
    %v289 = vpop.f32.mrb[0].mxu0
    %v290 = vadd.f32 %v133, %v289
    %v291 = vpop.f32.mrb[0].mxu0
    %292 = vmatprep.mubr.bf16.mxu0 0
    %293 = vmatmul.mubr.bf16.gmra.mrb[0].mxu0 %v198
    %v294 = vpop.f32.mrb[0].mxu0
    %v295 = vadd.f32 %v133, %v294
    %v296 = vpop.f32.mrb[0].mxu0
    %v297 = vpop.f32.mrb[0].mxu0
    %v298 = vadd.f32 %v133, %v297
    %v299 = vpop.f32.mrb[0].mxu0
    %300 = vdwg.mxu0
    %v301 = vmax.f32 %v239, 0.0
    %v302 = vmax.f32 %v242, 0.0
    %v303 = vmax.f32 %v247, 0.0
    %v304 = vmax.f32 %v250, 0.0
    %v305 = vmax.f32 %v255, 0.0
    %v306 = vmax.f32 %v258, 0.0
    %v307 = vmax.f32 %v263, 0.0
    %v308 = vmax.f32 %v266, 0.0
    %v309 = vmax.f32 %v271, 0.0
    %v310 = vmax.f32 %v274, 0.0
    %v311 = vmax.f32 %v279, 0.0
    %v312 = vmax.f32 %v282, 0.0
    %v313 = vmax.f32 %v287, 0.0
    %v314 = vmax.f32 %v290, 0.0
    %v315 = vmax.f32 %v295, 0.0
    %v316 = vmax.f32 %v298, 0.0
    %v317 = vpack.c.bf16 %v302, %v301
    %v318 = vpack.c.bf16 %v304, %v303
    %v319 = vpack.c.bf16 %v306, %v305
    %v320 = vpack.c.bf16 %v308, %v307
    %v321 = vpack.c.bf16 %v310, %v309
    %v322 = vpack.c.bf16 %v312, %v311
    %v323 = vpack.c.bf16 %v314, %v313
    %v324 = vpack.c.bf16 %v316, %v315
    %v325 = vld [vmem:[#allocation3] sm:$0xf]
    %v326 = vld [vmem:[#allocation3 + $0x4] sm:$0xf]
    %v327 = vld [vmem:[#allocation3 + $0x8] sm:$0xf]
    %v328 = vld [vmem:[#allocation3 + $0xc] sm:$0xf]
    %v329 = vld [vmem:[#allocation3 + $0x10] sm:$0xf]
    %v330 = vld [vmem:[#allocation3 + $0x14] sm:$0xf]
    %v331 = vld [vmem:[#allocation3 + $0x18] sm:$0xf]
    %v332 = vld [vmem:[#allocation3 + $0x1c] sm:$0xf]
    %v333 = vld [vmem:[#allocation5] sm:$0x1]
    %v335 = vlaneseq
    %v336 = vshrl.u32 %v335, 7
    %v337 = vsub.s32 0, %v336
    %v338 = vrot.slane %v333, %v337
    %v348 = vunpack.c.l.b16 %v325
    %v349 = vunpack.c.l.b16 %v326
    %v350 = vunpack.c.l.b16 %v327
    %v351 = vunpack.c.l.b16 %v328
    %v352 = vunpack.c.l.b16 %v329
    %v353 = vunpack.c.l.b16 %v330
    %v354 = vunpack.c.l.b16 %v331
    %v355 = vunpack.c.l.b16 %v332
    %v356 = vpack.c.b16 %v349, %v348
    %v357 = vpack.c.b16 %v351, %v350
    %v358 = vpack.c.b16 %v353, %v352
    %v359 = vpack.c.b16 %v355, %v354
    %vm364 = vcmask 523264
    %v366 = vsel %vm364, %v317, 0
    %v369 = vsel %vm364, %v318, 0
    %v372 = vsel %vm364, %v319, 0
    %v375 = vsel %vm364, %v320, 0
    %v378 = vsel %vm364, %v321, 0
    %v381 = vsel %vm364, %v322, 0
    %v384 = vsel %vm364, %v323, 0
    %v387 = vsel %vm364, %v324, 0
    %389 = vmatprep.subr.bf16.mxu0 0
    %390 = vmatpush1.bf16.msra.mxu0 %v356
    %391 = vmatprep.subr.bf16.mxu0 0
    %392 = vmatpush1.bf16.msra.mxu0 %v357
    %393 = vmatprep.subr.bf16.mxu0 0
    %394 = vmatpush1.bf16.msra.mxu0 %v358
    %395 = vmatprep.subr.bf16.mxu0 0
    %396 = vmatpush1.bf16.msra.mxu0 %v359
    %397 = vmatprep.subr.bf16.mxu0 0
    %398 = vmatpush1.bf16.msra.mxu0 0
    %399 = vmatprep.subr.bf16.mxu0 0
    %400 = vmatpush1.bf16.msra.mxu0 0
    %401 = vmatprep.subr.bf16.mxu0 0
    %402 = vmatpush1.bf16.msra.mxu0 0
    %403 = vmatprep.subr.bf16.mxu0 0
    %404 = vmatpush1.bf16.msra.mxu0 0
    %405 = vmatprep.subr.bf16.mxu0 0
    %406 = vmatpush1.bf16.msra.mxu0 0
    %407 = vmatprep.subr.bf16.mxu0 0
    %408 = vmatpush1.bf16.msra.mxu0 0
    %409 = vmatprep.subr.bf16.mxu0 0
    %410 = vmatpush1.bf16.msra.mxu0 0
    %411 = vmatprep.subr.bf16.mxu0 0
    %412 = vmatpush1.bf16.msra.mxu0 0
    %413 = vmatprep.subr.bf16.mxu0 0
    %414 = vmatpush1.bf16.msra.mxu0 0
    %415 = vmatprep.subr.bf16.mxu0 0
    %416 = vmatpush1.bf16.msra.mxu0 0
    %417 = vmatprep.subr.bf16.mxu0 0
    %418 = vmatpush1.bf16.msra.mxu0 0
    %419 = vmatprep.subr.bf16.mxu0 0
    %420 = vmatpush1.bf16.msra.mxu0 0
    %421 = vmatprep.mubr.bf16.mxu0 0
    %422 = vmatmul.mubr.bf16.gmra.mrb[0].mxu0 %v366
    %v423 = vpop.f32.mrb[0].mxu0
    %v424 = vadd.f32 %v338, %v423
    %v425 = vpop.f32.mrb[0].mxu0
    %v426 = vpop.f32.mrb[0].mxu0
    %v427 = vadd.f32 %v338, %v426
    %v428 = vpop.f32.mrb[0].mxu0
    %429 = vmatprep.mubr.bf16.mxu0 0
    %430 = vmatmul.mubr.bf16.gmra.mrb[0].mxu0 %v369
    %v431 = vpop.f32.mrb[0].mxu0
    %v432 = vadd.f32 %v338, %v431
    %v433 = vpop.f32.mrb[0].mxu0
    %v434 = vpop.f32.mrb[0].mxu0
    %v435 = vadd.f32 %v338, %v434
    %v436 = vpop.f32.mrb[0].mxu0
    %437 = vmatprep.mubr.bf16.mxu0 0
    %438 = vmatmul.mubr.bf16.gmra.mrb[0].mxu0 %v372
    %v439 = vpop.f32.mrb[0].mxu0
    %v440 = vadd.f32 %v338, %v439
    %v441 = vpop.f32.mrb[0].mxu0
    %v442 = vpop.f32.mrb[0].mxu0
    %v443 = vadd.f32 %v338, %v442
    %v444 = vpop.f32.mrb[0].mxu0
    %445 = vmatprep.mubr.bf16.mxu0 0
    %446 = vmatmul.mubr.bf16.gmra.mrb[0].mxu0 %v375
    %v447 = vpop.f32.mrb[0].mxu0
    %v448 = vadd.f32 %v338, %v447
    %v449 = vpop.f32.mrb[0].mxu0
    %v450 = vpop.f32.mrb[0].mxu0
    %v451 = vadd.f32 %v338, %v450
    %v452 = vpop.f32.mrb[0].mxu0
    %453 = vmatprep.mubr.bf16.mxu0 0
    %454 = vmatmul.mubr.bf16.gmra.mrb[0].mxu0 %v378
    %v455 = vpop.f32.mrb[0].mxu0
    %v456 = vadd.f32 %v338, %v455
    %v457 = vpop.f32.mrb[0].mxu0
    %v458 = vpop.f32.mrb[0].mxu0
    %v459 = vadd.f32 %v338, %v458
    %v460 = vpop.f32.mrb[0].mxu0
    %461 = vmatprep.mubr.bf16.mxu0 0
    %462 = vmatmul.mubr.bf16.gmra.mrb[0].mxu0 %v381
    %v463 = vpop.f32.mrb[0].mxu0
    %v464 = vadd.f32 %v338, %v463
    %v465 = vpop.f32.mrb[0].mxu0
    %v466 = vpop.f32.mrb[0].mxu0
    %v467 = vadd.f32 %v338, %v466
    %v468 = vpop.f32.mrb[0].mxu0
    %469 = vmatprep.mubr.bf16.mxu0 0
    %470 = vmatmul.mubr.bf16.gmra.mrb[0].mxu0 %v384
    %v471 = vpop.f32.mrb[0].mxu0
    %v472 = vadd.f32 %v338, %v471
    %v473 = vpop.f32.mrb[0].mxu0
    %v474 = vpop.f32.mrb[0].mxu0
    %v475 = vadd.f32 %v338, %v474
    %v476 = vpop.f32.mrb[0].mxu0
    %477 = vmatprep.mubr.bf16.mxu0 0
    %478 = vmatmul.mubr.bf16.gmra.mrb[0].mxu0 %v387
    %v479 = vpop.f32.mrb[0].mxu0
    %v480 = vadd.f32 %v338, %v479
    %v481 = vpop.f32.mrb[0].mxu0
    %v482 = vpop.f32.mrb[0].mxu0
    %v483 = vadd.f32 %v338, %v482
    %v484 = vpop.f32.mrb[0].mxu0
    %485 = vdwg.mxu0
    %v486 = vmax.f32 %v424, 0.0
    %v487 = vmax.f32 %v427, 0.0
    %v488 = vmax.f32 %v432, 0.0
    %v489 = vmax.f32 %v435, 0.0
    %v490 = vmax.f32 %v440, 0.0
    %v491 = vmax.f32 %v443, 0.0
    %v492 = vmax.f32 %v448, 0.0
    %v493 = vmax.f32 %v451, 0.0
    %v494 = vmax.f32 %v456, 0.0
    %v495 = vmax.f32 %v459, 0.0
    %v496 = vmax.f32 %v464, 0.0
    %v497 = vmax.f32 %v467, 0.0
    %v498 = vmax.f32 %v472, 0.0
    %v499 = vmax.f32 %v475, 0.0
    %v500 = vmax.f32 %v480, 0.0
    %v501 = vmax.f32 %v483, 0.0
    %v502 = vpack.c.bf16 %v487, %v486
    %v503 = vpack.c.bf16 %v489, %v488
    %v504 = vpack.c.bf16 %v491, %v490
    %v505 = vpack.c.bf16 %v493, %v492
    %v506 = vpack.c.bf16 %v495, %v494
    %v507 = vpack.c.bf16 %v497, %v496
    %v508 = vpack.c.bf16 %v499, %v498
    %v509 = vpack.c.bf16 %v501, %v500
    %v510 = vld [vmem:[%s5] sm:$0xff]
    %v511 = vld [vmem:[%s5 + $0x8] sm:$0xff]
    %v512 = vld [vmem:[%s5 + $0x10] sm:$0xff]
    %v513 = vld [vmem:[%s5 + $0x18] sm:$0xff]
    %v514 = vld [vmem:[%s5 + $0x20] sm:$0xff]
    %v515 = vld [vmem:[%s5 + $0x28] sm:$0xff]
    %v516 = vld [vmem:[%s5 + $0x30] sm:$0xff]
    %v517 = vld [vmem:[%s5 + $0x38] sm:$0xff]
    %v518 = vld [vmem:[%s5 + $0x40] sm:$0xff]
    %v519 = vld [vmem:[%s5 + $0x48] sm:$0xff]
    %v520 = vld [vmem:[%s5 + $0x50] sm:$0xff]
    %v521 = vld [vmem:[%s5 + $0x58] sm:$0xff]
    %v522 = vld [vmem:[%s5 + $0x60] sm:$0xff]
    %v523 = vld [vmem:[%s5 + $0x68] sm:$0xff]
    %v524 = vld [vmem:[%s5 + $0x70] sm:$0xff]
    %v525 = vld [vmem:[%s5 + $0x78] sm:$0xff]
    %v542 = vunpack.c.l.b16 %v510
    %v543 = vunpack.c.h.b16 %v510
    %v544 = vunpack.c.l.b16 %v511
    %v545 = vunpack.c.h.b16 %v511
    %v546 = vunpack.c.l.b16 %v512
    %v547 = vunpack.c.h.b16 %v512
    %v548 = vunpack.c.l.b16 %v513
    %v549 = vunpack.c.h.b16 %v513
    %v550 = vunpack.c.l.b16 %v514
    %v551 = vunpack.c.h.b16 %v514
    %v552 = vunpack.c.l.b16 %v515
    %v553 = vunpack.c.h.b16 %v515
    %v554 = vunpack.c.l.b16 %v516
    %v555 = vunpack.c.h.b16 %v516
    %v556 = vunpack.c.l.b16 %v517
    %v557 = vunpack.c.h.b16 %v517
    %v558 = vunpack.c.l.b16 %v518
    %v559 = vunpack.c.h.b16 %v518
    %v560 = vunpack.c.l.b16 %v519
    %v561 = vunpack.c.h.b16 %v519
    %v562 = vunpack.c.l.b16 %v520
    %v563 = vunpack.c.h.b16 %v520
    %v564 = vunpack.c.l.b16 %v521
    %v565 = vunpack.c.h.b16 %v521
    %v566 = vunpack.c.l.b16 %v522
    %v567 = vunpack.c.h.b16 %v522
    %v568 = vunpack.c.l.b16 %v523
    %v569 = vunpack.c.h.b16 %v523
    %v570 = vunpack.c.l.b16 %v524
    %v571 = vunpack.c.h.b16 %v524
    %v572 = vunpack.c.l.b16 %v525
    %v573 = vunpack.c.h.b16 %v525
    %v574 = vpack.c.b16 %v544, %v542
    %v575 = vpack.c.b16 %v545, %v543
    %v576 = vpack.c.b16 %v548, %v546
    %v577 = vpack.c.b16 %v549, %v547
    %v578 = vpack.c.b16 %v552, %v550
    %v579 = vpack.c.b16 %v553, %v551
    %v580 = vpack.c.b16 %v556, %v554
    %v581 = vpack.c.b16 %v557, %v555
    %v582 = vpack.c.b16 %v560, %v558
    %v583 = vpack.c.b16 %v561, %v559
    %v584 = vpack.c.b16 %v564, %v562
    %v585 = vpack.c.b16 %v565, %v563
    %v586 = vpack.c.b16 %v568, %v566
    %v587 = vpack.c.b16 %v569, %v567
    %v588 = vpack.c.b16 %v572, %v570
    %v589 = vpack.c.b16 %v573, %v571
    %606 = vmatprep.subr.bf16.mxu0 %v575
    %607 = vmatpush1.bf16.msra.mxu0 %v574
    %608 = vmatprep.subr.bf16.mxu0 %v577
    %609 = vmatpush1.bf16.msra.mxu0 %v576
    %610 = vmatprep.subr.bf16.mxu0 %v579
    %611 = vmatpush1.bf16.msra.mxu0 %v578
    %612 = vmatprep.subr.bf16.mxu0 %v581
    %613 = vmatpush1.bf16.msra.mxu0 %v580
    %614 = vmatprep.subr.bf16.mxu0 %v583
    %615 = vmatpush1.bf16.msra.mxu0 %v582
    %616 = vmatprep.subr.bf16.mxu0 %v585
    %617 = vmatpush1.bf16.msra.mxu0 %v584
    %618 = vmatprep.subr.bf16.mxu0 %v587
    %619 = vmatpush1.bf16.msra.mxu0 %v586
    %620 = vmatprep.subr.bf16.mxu0 %v589
    %621 = vmatpush1.bf16.msra.mxu0 %v588
    %622 = vmatprep.subr.bf16.mxu0 0
    %623 = vmatpush1.bf16.msra.mxu0 0
    %624 = vmatprep.subr.bf16.mxu0 0
    %625 = vmatpush1.bf16.msra.mxu0 0
    %626 = vmatprep.subr.bf16.mxu0 0
    %627 = vmatpush1.bf16.msra.mxu0 0
    %628 = vmatprep.subr.bf16.mxu0 0
    %629 = vmatpush1.bf16.msra.mxu0 0
    %630 = vmatprep.subr.bf16.mxu0 0
    %631 = vmatpush1.bf16.msra.mxu0 0
    %632 = vmatprep.subr.bf16.mxu0 0
    %633 = vmatpush1.bf16.msra.mxu0 0
    %634 = vmatprep.subr.bf16.mxu0 0
    %635 = vmatpush1.bf16.msra.mxu0 0
    %636 = vmatprep.subr.bf16.mxu0 0
    %637 = vmatpush1.bf16.msra.mxu0 0
    %638 = vmatprep.mubr.bf16.mxu0 0
    %639 = vmatmul.mubr.bf16.gmra.mrb[0].mxu0 %v502
    %v640 = vpop.f32.mrb[0].mxu0
    %v641 = vadd.f32 0.0, %v640
    %v642 = vpop.f32.mrb[0].mxu0
    %v643 = vadd.f32 0.0, %v642
    %v644 = vpop.f32.mrb[0].mxu0
    %v645 = vadd.f32 0.0, %v644
    %v646 = vpop.f32.mrb[0].mxu0
    %v647 = vadd.f32 0.0, %v646
    %648 = vmatprep.mubr.bf16.mxu0 0
    %649 = vmatmul.mubr.bf16.gmra.mrb[0].mxu0 %v503
    %v650 = vpop.f32.mrb[0].mxu0
    %v651 = vadd.f32 0.0, %v650
    %v652 = vpop.f32.mrb[0].mxu0
    %v653 = vadd.f32 0.0, %v652
    %v654 = vpop.f32.mrb[0].mxu0
    %v655 = vadd.f32 0.0, %v654
    %v656 = vpop.f32.mrb[0].mxu0
    %v657 = vadd.f32 0.0, %v656
    %658 = vmatprep.mubr.bf16.mxu0 0
    %659 = vmatmul.mubr.bf16.gmra.mrb[0].mxu0 %v504
    %v660 = vpop.f32.mrb[0].mxu0
    %v661 = vadd.f32 0.0, %v660
    %v662 = vpop.f32.mrb[0].mxu0
    %v663 = vadd.f32 0.0, %v662
    %v664 = vpop.f32.mrb[0].mxu0
    %v665 = vadd.f32 0.0, %v664
    %v666 = vpop.f32.mrb[0].mxu0
    %v667 = vadd.f32 0.0, %v666
    %668 = vmatprep.mubr.bf16.mxu0 0
    %669 = vmatmul.mubr.bf16.gmra.mrb[0].mxu0 %v505
    %v670 = vpop.f32.mrb[0].mxu0
    %v671 = vadd.f32 0.0, %v670
    %v672 = vpop.f32.mrb[0].mxu0
    %v673 = vadd.f32 0.0, %v672
    %v674 = vpop.f32.mrb[0].mxu0
    %v675 = vadd.f32 0.0, %v674
    %v676 = vpop.f32.mrb[0].mxu0
    %v677 = vadd.f32 0.0, %v676
    %678 = vmatprep.mubr.bf16.mxu0 0
    %679 = vmatmul.mubr.bf16.gmra.mrb[0].mxu0 %v506
    %v680 = vpop.f32.mrb[0].mxu0
    %v681 = vadd.f32 0.0, %v680
    %v682 = vpop.f32.mrb[0].mxu0
    %v683 = vadd.f32 0.0, %v682
    %v684 = vpop.f32.mrb[0].mxu0
    %v685 = vadd.f32 0.0, %v684
    %v686 = vpop.f32.mrb[0].mxu0
    %v687 = vadd.f32 0.0, %v686
    %688 = vmatprep.mubr.bf16.mxu0 0
    %689 = vmatmul.mubr.bf16.gmra.mrb[0].mxu0 %v507
    %v690 = vpop.f32.mrb[0].mxu0
    %v691 = vadd.f32 0.0, %v690
    %v692 = vpop.f32.mrb[0].mxu0
    %v693 = vadd.f32 0.0, %v692
    %v694 = vpop.f32.mrb[0].mxu0
    %v695 = vadd.f32 0.0, %v694
    %v696 = vpop.f32.mrb[0].mxu0
    %v697 = vadd.f32 0.0, %v696
    %698 = vmatprep.mubr.bf16.mxu0 0
    %699 = vmatmul.mubr.bf16.gmra.mrb[0].mxu0 %v508
    %v700 = vpop.f32.mrb[0].mxu0
    %v701 = vadd.f32 0.0, %v700
    %v702 = vpop.f32.mrb[0].mxu0
    %v703 = vadd.f32 0.0, %v702
    %v704 = vpop.f32.mrb[0].mxu0
    %v705 = vadd.f32 0.0, %v704
    %v706 = vpop.f32.mrb[0].mxu0
    %v707 = vadd.f32 0.0, %v706
    %708 = vmatprep.mubr.bf16.mxu0 0
    %709 = vmatmul.mubr.bf16.gmra.mrb[0].mxu0 %v509
    %v710 = vpop.f32.mrb[0].mxu0
    %v711 = vadd.f32 0.0, %v710
    %v712 = vpop.f32.mrb[0].mxu0
    %v713 = vadd.f32 0.0, %v712
    %v714 = vpop.f32.mrb[0].mxu0
    %v715 = vadd.f32 0.0, %v714
    %v716 = vpop.f32.mrb[0].mxu0
    %v717 = vadd.f32 0.0, %v716
    %718 = vdwg.mxu0
    %v719 = vmax.f32 %v641, %v645
    %v720 = vrot.slane %v719, 4
    %v721 = vmax.f32 %v719, %v720
    %v722 = vrot.slane %v721, 2
    %v723 = vmax.f32 %v721, %v722
    %v724 = vrot.slane %v723, 1
    %v725 = vmax.f32 %v723, %v724
    %v726 = vmax.f32 %v643, %v647
    %v727 = vrot.slane %v726, 4
    %v728 = vmax.f32 %v726, %v727
    %v729 = vrot.slane %v728, 2
    %v730 = vmax.f32 %v728, %v729
    %v731 = vrot.slane %v730, 1
    %v732 = vmax.f32 %v730, %v731
    %v733 = vmax.f32 %v651, %v655
    %v734 = vrot.slane %v733, 4
    %v735 = vmax.f32 %v733, %v734
    %v736 = vrot.slane %v735, 2
    %v737 = vmax.f32 %v735, %v736
    %v738 = vrot.slane %v737, 1
    %v739 = vmax.f32 %v737, %v738
    %v740 = vmax.f32 %v653, %v657
    %v741 = vrot.slane %v740, 4
    %v742 = vmax.f32 %v740, %v741
    %v743 = vrot.slane %v742, 2
    %v744 = vmax.f32 %v742, %v743
    %v745 = vrot.slane %v744, 1
    %v746 = vmax.f32 %v744, %v745
    %v747 = vmax.f32 %v661, %v665
    %v748 = vrot.slane %v747, 4
    %v749 = vmax.f32 %v747, %v748
    %v750 = vrot.slane %v749, 2
    %v751 = vmax.f32 %v749, %v750
    %v752 = vrot.slane %v751, 1
    %v753 = vmax.f32 %v751, %v752
    %v754 = vmax.f32 %v663, %v667
    %v755 = vrot.slane %v754, 4
    %v756 = vmax.f32 %v754, %v755
    %v757 = vrot.slane %v756, 2
    %v758 = vmax.f32 %v756, %v757
    %v759 = vrot.slane %v758, 1
    %v760 = vmax.f32 %v758, %v759
    %v761 = vmax.f32 %v671, %v675
    %v762 = vrot.slane %v761, 4
    %v763 = vmax.f32 %v761, %v762
    %v764 = vrot.slane %v763, 2
    %v765 = vmax.f32 %v763, %v764
    %v766 = vrot.slane %v765, 1
    %v767 = vmax.f32 %v765, %v766
    %v768 = vmax.f32 %v673, %v677
    %v769 = vrot.slane %v768, 4
    %v770 = vmax.f32 %v768, %v769
    %v771 = vrot.slane %v770, 2
    %v772 = vmax.f32 %v770, %v771
    %v773 = vrot.slane %v772, 1
    %v774 = vmax.f32 %v772, %v773
    %v775 = vmax.f32 %v681, %v685
    %v776 = vrot.slane %v775, 4
    %v777 = vmax.f32 %v775, %v776
    %v778 = vrot.slane %v777, 2
    %v779 = vmax.f32 %v777, %v778
    %v780 = vrot.slane %v779, 1
    %v781 = vmax.f32 %v779, %v780
    %v782 = vmax.f32 %v683, %v687
    %v783 = vrot.slane %v782, 4
    %v784 = vmax.f32 %v782, %v783
    %v785 = vrot.slane %v784, 2
    %v786 = vmax.f32 %v784, %v785
    %v787 = vrot.slane %v786, 1
    %v788 = vmax.f32 %v786, %v787
    %v789 = vmax.f32 %v691, %v695
    %v790 = vrot.slane %v789, 4
    %v791 = vmax.f32 %v789, %v790
    %v792 = vrot.slane %v791, 2
    %v793 = vmax.f32 %v791, %v792
    %v794 = vrot.slane %v793, 1
    %v795 = vmax.f32 %v793, %v794
    %v796 = vmax.f32 %v693, %v697
    %v797 = vrot.slane %v796, 4
    %v798 = vmax.f32 %v796, %v797
    %v799 = vrot.slane %v798, 2
    %v800 = vmax.f32 %v798, %v799
    %v801 = vrot.slane %v800, 1
    %v802 = vmax.f32 %v800, %v801
    %v803 = vmax.f32 %v701, %v705
    %v804 = vrot.slane %v803, 4
    %v805 = vmax.f32 %v803, %v804
    %v806 = vrot.slane %v805, 2
    %v807 = vmax.f32 %v805, %v806
    %v808 = vrot.slane %v807, 1
    %v809 = vmax.f32 %v807, %v808
    %v810 = vmax.f32 %v703, %v707
    %v811 = vrot.slane %v810, 4
    %v812 = vmax.f32 %v810, %v811
    %v813 = vrot.slane %v812, 2
    %v814 = vmax.f32 %v812, %v813
    %v815 = vrot.slane %v814, 1
    %v816 = vmax.f32 %v814, %v815
    %v817 = vmax.f32 %v711, %v715
    %v818 = vrot.slane %v817, 4
    %v819 = vmax.f32 %v817, %v818
    %v820 = vrot.slane %v819, 2
    %v821 = vmax.f32 %v819, %v820
    %v822 = vrot.slane %v821, 1
    %v823 = vmax.f32 %v821, %v822
    %v824 = vmax.f32 %v713, %v717
    %v825 = vrot.slane %v824, 4
    %v826 = vmax.f32 %v824, %v825
    %v827 = vrot.slane %v826, 2
    %v828 = vmax.f32 %v826, %v827
    %v829 = vrot.slane %v828, 1
    %v830 = vmax.f32 %v828, %v829
    %p831 = scmp.eq.s32.totalorder 0, 0
    // Predicated region
    $region74: #{_stn3d_pallas.1} parent=1 // pred_check
      %p832 = pneg %p831
    $region75: #{_stn3d_pallas.1} parent=1 // pred_check_branch
      %834 = sbr.rel (%p832) target = $region77
    $region76: #{_stn3d_pallas.1} parent=1 // pred_region
      %835 = vst [vmem:[#allocation2] sm:$0xff] -inf
      %836 = vst [vmem:[#allocation2 + $0x8] sm:$0xff] -inf
    $region77: #{_stn3d_pallas.1} parent=1 // pred_fallthru
      _
    %v837 = vld [vmem:[#allocation2] sm:$0xff]
    %v838 = vld [vmem:[#allocation2 + $0x8] sm:$0xff]
    %vm855 = vcmask 1041409
    %v856 = vsel %vm855, %v739, %v725
    %vm857 = vcmask 1042434
    %v858 = vsel %vm857, %v753, %v856
    %vm859 = vcmask 1043459
    %v860 = vsel %vm859, %v767, %v858
    %vm861 = vcmask 1044484
    %v862 = vsel %vm861, %v781, %v860
    %vm863 = vcmask 1045509
    %v864 = vsel %vm863, %v795, %v862
    %vm865 = vcmask 1046534
    %v866 = vsel %vm865, %v809, %v864
    %vm867 = vcmask 1047559
    %v868 = vsel %vm867, %v823, %v866
    %v869 = vsel %vm855, %v746, %v732
    %v870 = vsel %vm857, %v760, %v869
    %v871 = vsel %vm859, %v774, %v870
    %v872 = vsel %vm861, %v788, %v871
    %v873 = vsel %vm863, %v802, %v872
    %v874 = vsel %vm865, %v816, %v873
    %v875 = vsel %vm867, %v830, %v874
    %v878 = vmax.f32 %v837, %v868
    %v879 = vmax.f32 %v838, %v875
    %880 = vst [vmem:[#allocation2] sm:$0xff] %v878
    %881 = vst [vmem:[#allocation2 + $0x8] sm:$0xff] %v879
    // Predicated region
    $region78: #{_stn3d_pallas.1} parent=1 // pred_check
      %p882 = pneg %p831
    $region79: #{_stn3d_pallas.1} parent=1 // pred_check_branch
      %884 = sbr.rel (%p882) target = $region81
    $region80: #{_stn3d_pallas.1} parent=1 // pred_region
      %v885 = vld [vmem:[#allocation2] sm:$0xff]
      %v886 = vld [vmem:[#allocation2 + $0x8] sm:$0xff]
      %v887 = vld [vmem:[%s6] sm:$0x3]
      %v889 = vlaneseq
      %v890 = vshrl.u32 %v889, 7
      %v891 = vsub.s32 0, %v890
      %v892 = vrot.slane %v887, %v891
      %v893 = vlaneseq
      %v894 = vshrl.u32 %v893, 7
      %v895 = vsub.s32 1, %v894
      %v896 = vrot.slane %v887, %v895
      %v899 = vadd.f32 %v885, %v892
      %v900 = vadd.f32 %v886, %v896
      %v901 = vmax.f32 %v899, 0.0
      %v902 = vmax.f32 %v900, 0.0
      %v903 = vpack.c.bf16 %v901, %v901
      %v904 = vpack.c.bf16 %v902, %v902
      %v905 = vld [vmem:[#allocation7] sm:$0xff]
      %v906 = vld [vmem:[#allocation7 + $0x8] sm:$0xff]
      %v907 = vld [vmem:[#allocation7 + $0x10] sm:$0xff]
      %v908 = vld [vmem:[#allocation7 + $0x18] sm:$0xff]
      %v909 = vld [vmem:[#allocation7 + $0x20] sm:$0xff]
      %v910 = vld [vmem:[#allocation7 + $0x28] sm:$0xff]
      %v911 = vld [vmem:[#allocation7 + $0x30] sm:$0xff]
      %v912 = vld [vmem:[#allocation7 + $0x38] sm:$0xff]
      %v913 = vld [vmem:[#allocation7 + $0x40] sm:$0xff]
      %v914 = vld [vmem:[#allocation7 + $0x48] sm:$0xff]
      %v915 = vld [vmem:[#allocation7 + $0x50] sm:$0xff]
      %v916 = vld [vmem:[#allocation7 + $0x58] sm:$0xff]
      %v917 = vld [vmem:[#allocation7 + $0x60] sm:$0xff]
      %v918 = vld [vmem:[#allocation7 + $0x68] sm:$0xff]
      %v919 = vld [vmem:[#allocation7 + $0x70] sm:$0xff]
      %v920 = vld [vmem:[#allocation7 + $0x78] sm:$0xff]
      %v921 = vld [vmem:[#allocation7 + $0x80] sm:$0xff]
      %v922 = vld [vmem:[#allocation7 + $0x88] sm:$0xff]
      %v923 = vld [vmem:[#allocation7 + $0x90] sm:$0xff]
      %v924 = vld [vmem:[#allocation7 + $0x98] sm:$0xff]
      %v925 = vld [vmem:[#allocation7 + $0xa0] sm:$0xff]
      %v926 = vld [vmem:[#allocation7 + $0xa8] sm:$0xff]
      %v927 = vld [vmem:[#allocation7 + $0xb0] sm:$0xff]
      %v928 = vld [vmem:[#allocation7 + $0xb8] sm:$0xff]
      %v929 = vld [vmem:[#allocation7 + $0xc0] sm:$0xff]
      %v930 = vld [vmem:[#allocation7 + $0xc8] sm:$0xff]
      %v931 = vld [vmem:[#allocation7 + $0xd0] sm:$0xff]
      %v932 = vld [vmem:[#allocation7 + $0xd8] sm:$0xff]
      %v933 = vld [vmem:[#allocation7 + $0xe0] sm:$0xff]
      %v934 = vld [vmem:[#allocation7 + $0xe8] sm:$0xff]
      %v935 = vld [vmem:[#allocation7 + $0xf0] sm:$0xff]
      %v936 = vld [vmem:[#allocation7 + $0xf8] sm:$0xff]
      %v937 = vld [vmem:[#allocation7 + $0x100] sm:$0xff]
      %v938 = vld [vmem:[#allocation7 + $0x108] sm:$0xff]
      %v939 = vld [vmem:[#allocation7 + $0x110] sm:$0xff]
      %v940 = vld [vmem:[#allocation7 + $0x118] sm:$0xff]
      %v941 = vld [vmem:[#allocation7 + $0x120] sm:$0xff]
      %v942 = vld [vmem:[#allocation7 + $0x128] sm:$0xff]
      %v943 = vld [vmem:[#allocation7 + $0x130] sm:$0xff]
      %v944 = vld [vmem:[#allocation7 + $0x138] sm:$0xff]
      %v945 = vld [vmem:[#allocation7 + $0x140] sm:$0xff]
      %v946 = vld [vmem:[#allocation7 + $0x148] sm:$0xff]
      %v947 = vld [vmem:[#allocation7 + $0x150] sm:$0xff]
      %v948 = vld [vmem:[#allocation7 + $0x158] sm:$0xff]
      %v949 = vld [vmem:[#allocation7 + $0x160] sm:$0xff]
      %v950 = vld [vmem:[#allocation7 + $0x168] sm:$0xff]
      %v951 = vld [vmem:[#allocation7 + $0x170] sm:$0xff]
      %v952 = vld [vmem:[#allocation7 + $0x178] sm:$0xff]
      %v953 = vld [vmem:[#allocation7 + $0x180] sm:$0xff]
      %v954 = vld [vmem:[#allocation7 + $0x188] sm:$0xff]
      %v955 = vld [vmem:[#allocation7 + $0x190] sm:$0xff]
      %v956 = vld [vmem:[#allocation7 + $0x198] sm:$0xff]
      %v957 = vld [vmem:[#allocation7 + $0x1a0] sm:$0xff]
      %v958 = vld [vmem:[#allocation7 + $0x1a8] sm:$0xff]
      %v959 = vld [vmem:[#allocation7 + $0x1b0] sm:$0xff]
      %v960 = vld [vmem:[#allocation7 + $0x1b8] sm:$0xff]
      %v961 = vld [vmem:[#allocation7 + $0x1c0] sm:$0xff]
      %v962 = vld [vmem:[#allocation7 + $0x1c8] sm:$0xff]
      %v963 = vld [vmem:[#allocation7 + $0x1d0] sm:$0xff]
      %v964 = vld [vmem:[#allocation7 + $0x1d8] sm:$0xff]
      %v965 = vld [vmem:[#allocation7 + $0x1e0] sm:$0xff]
      %v966 = vld [vmem:[#allocation7 + $0x1e8] sm:$0xff]
      %v967 = vld [vmem:[#allocation7 + $0x1f0] sm:$0xff]
      %v968 = vld [vmem:[#allocation7 + $0x1f8] sm:$0xff]
      %v969 = vld [vmem:[%s8] sm:$0xf]
      %v971 = vlaneseq
      %v972 = vshrl.u32 %v971, 7
      %v973 = vsub.s32 0, %v972
      %v974 = vrot.slane %v969, %v973
      %v975 = vlaneseq
      %v976 = vshrl.u32 %v975, 7
      %v977 = vsub.s32 1, %v976
      %v978 = vrot.slane %v969, %v977
      %v979 = vlaneseq
      %v980 = vshrl.u32 %v979, 7
      %v981 = vsub.s32 2, %v980
      %v982 = vrot.slane %v969, %v981
      %v983 = vlaneseq
      %v984 = vshrl.u32 %v983, 7
      %v985 = vsub.s32 3, %v984
      %v986 = vrot.slane %v969, %v985
      %v1055 = vunpack.c.l.b16 %v905
      %v1056 = vunpack.c.h.b16 %v905
      %v1057 = vunpack.c.l.b16 %v906
      %v1058 = vunpack.c.h.b16 %v906
      %v1059 = vunpack.c.l.b16 %v907
      %v1060 = vunpack.c.h.b16 %v907
      %v1061 = vunpack.c.l.b16 %v908
      %v1062 = vunpack.c.h.b16 %v908
      %v1063 = vunpack.c.l.b16 %v909
      %v1064 = vunpack.c.h.b16 %v909
      %v1065 = vunpack.c.l.b16 %v910
      %v1066 = vunpack.c.h.b16 %v910
      %v1067 = vunpack.c.l.b16 %v911
      %v1068 = vunpack.c.h.b16 %v911
      %v1069 = vunpack.c.l.b16 %v912
      %v1070 = vunpack.c.h.b16 %v912
      %v1071 = vunpack.c.l.b16 %v913
      %v1072 = vunpack.c.h.b16 %v913
      %v1073 = vunpack.c.l.b16 %v914
      %v1074 = vunpack.c.h.b16 %v914
      %v1075 = vunpack.c.l.b16 %v915
      %v1076 = vunpack.c.h.b16 %v915
      %v1077 = vunpack.c.l.b16 %v916
      %v1078 = vunpack.c.h.b16 %v916
      %v1079 = vunpack.c.l.b16 %v917
      %v1080 = vunpack.c.h.b16 %v917
      %v1081 = vunpack.c.l.b16 %v918
      %v1082 = vunpack.c.h.b16 %v918
      %v1083 = vunpack.c.l.b16 %v919
      %v1084 = vunpack.c.h.b16 %v919
      %v1085 = vunpack.c.l.b16 %v920
      %v1086 = vunpack.c.h.b16 %v920
      %v1087 = vunpack.c.l.b16 %v921
      %v1088 = vunpack.c.h.b16 %v921
      %v1089 = vunpack.c.l.b16 %v922
      %v1090 = vunpack.c.h.b16 %v922
      %v1091 = vunpack.c.l.b16 %v923
      %v1092 = vunpack.c.h.b16 %v923
      %v1093 = vunpack.c.l.b16 %v924
      %v1094 = vunpack.c.h.b16 %v924
      %v1095 = vunpack.c.l.b16 %v925
      %v1096 = vunpack.c.h.b16 %v925
      %v1097 = vunpack.c.l.b16 %v926
      %v1098 = vunpack.c.h.b16 %v926
      %v1099 = vunpack.c.l.b16 %v927
      %v1100 = vunpack.c.h.b16 %v927
      %v1101 = vunpack.c.l.b16 %v928
      %v1102 = vunpack.c.h.b16 %v928
      %v1103 = vunpack.c.l.b16 %v929
      %v1104 = vunpack.c.h.b16 %v929
      %v1105 = vunpack.c.l.b16 %v930
      %v1106 = vunpack.c.h.b16 %v930
      %v1107 = vunpack.c.l.b16 %v931
      %v1108 = vunpack.c.h.b16 %v931
      %v1109 = vunpack.c.l.b16 %v932
      %v1110 = vunpack.c.h.b16 %v932
      %v1111 = vunpack.c.l.b16 %v933
      %v1112 = vunpack.c.h.b16 %v933
      %v1113 = vunpack.c.l.b16 %v934
      %v1114 = vunpack.c.h.b16 %v934
      %v1115 = vunpack.c.l.b16 %v935
      %v1116 = vunpack.c.h.b16 %v935
      %v1117 = vunpack.c.l.b16 %v936
      %v1118 = vunpack.c.h.b16 %v936
      %v1119 = vunpack.c.l.b16 %v937
      %v1120 = vunpack.c.h.b16 %v937
      %v1121 = vunpack.c.l.b16 %v938
      %v1122 = vunpack.c.h.b16 %v938
      %v1123 = vunpack.c.l.b16 %v939
      %v1124 = vunpack.c.h.b16 %v939
      %v1125 = vunpack.c.l.b16 %v940
      %v1126 = vunpack.c.h.b16 %v940
      %v1127 = vunpack.c.l.b16 %v941
      %v1128 = vunpack.c.h.b16 %v941
      %v1129 = vunpack.c.l.b16 %v942
      %v1130 = vunpack.c.h.b16 %v942
      %v1131 = vunpack.c.l.b16 %v943
      %v1132 = vunpack.c.h.b16 %v943
      %v1133 = vunpack.c.l.b16 %v944
      %v1134 = vunpack.c.h.b16 %v944
      %v1135 = vunpack.c.l.b16 %v945
      %v1136 = vunpack.c.h.b16 %v945
      %v1137 = vunpack.c.l.b16 %v946
      %v1138 = vunpack.c.h.b16 %v946
      %v1139 = vunpack.c.l.b16 %v947
      %v1140 = vunpack.c.h.b16 %v947
      %v1141 = vunpack.c.l.b16 %v948
      %v1142 = vunpack.c.h.b16 %v948
      %v1143 = vunpack.c.l.b16 %v949
      %v1144 = vunpack.c.h.b16 %v949
      %v1145 = vunpack.c.l.b16 %v950
      %v1146 = vunpack.c.h.b16 %v950
      %v1147 = vunpack.c.l.b16 %v951
      %v1148 = vunpack.c.h.b16 %v951
      %v1149 = vunpack.c.l.b16 %v952
      %v1150 = vunpack.c.h.b16 %v952
      %v1151 = vunpack.c.l.b16 %v953
      %v1152 = vunpack.c.h.b16 %v953
      %v1153 = vunpack.c.l.b16 %v954
      %v1154 = vunpack.c.h.b16 %v954
      %v1155 = vunpack.c.l.b16 %v955
      %v1156 = vunpack.c.h.b16 %v955
      %v1157 = vunpack.c.l.b16 %v956
      %v1158 = vunpack.c.h.b16 %v956
      %v1159 = vunpack.c.l.b16 %v957
      %v1160 = vunpack.c.h.b16 %v957
      %v1161 = vunpack.c.l.b16 %v958
      %v1162 = vunpack.c.h.b16 %v958
      %v1163 = vunpack.c.l.b16 %v959
      %v1164 = vunpack.c.h.b16 %v959
      %v1165 = vunpack.c.l.b16 %v960
      %v1166 = vunpack.c.h.b16 %v960
      %v1167 = vunpack.c.l.b16 %v961
      %v1168 = vunpack.c.h.b16 %v961
      %v1169 = vunpack.c.l.b16 %v962
      %v1170 = vunpack.c.h.b16 %v962
      %v1171 = vunpack.c.l.b16 %v963
      %v1172 = vunpack.c.h.b16 %v963
      %v1173 = vunpack.c.l.b16 %v964
      %v1174 = vunpack.c.h.b16 %v964
      %v1175 = vunpack.c.l.b16 %v965
      %v1176 = vunpack.c.h.b16 %v965
      %v1177 = vunpack.c.l.b16 %v966
      %v1178 = vunpack.c.h.b16 %v966
      %v1179 = vunpack.c.l.b16 %v967
      %v1180 = vunpack.c.h.b16 %v967
      %v1181 = vunpack.c.l.b16 %v968
      %v1182 = vunpack.c.h.b16 %v968
      %v1183 = vpack.c.b16 %v1059, %v1055
      %v1184 = vpack.c.b16 %v1060, %v1056
      %v1185 = vpack.c.b16 %v1061, %v1057
      %v1186 = vpack.c.b16 %v1062, %v1058
      %v1187 = vpack.c.b16 %v1067, %v1063
      %v1188 = vpack.c.b16 %v1068, %v1064
      %v1189 = vpack.c.b16 %v1069, %v1065
      %v1190 = vpack.c.b16 %v1070, %v1066
      %v1191 = vpack.c.b16 %v1075, %v1071
      %v1192 = vpack.c.b16 %v1076, %v1072
      %v1193 = vpack.c.b16 %v1077, %v1073
      %v1194 = vpack.c.b16 %v1078, %v1074
      %v1195 = vpack.c.b16 %v1083, %v1079
      %v1196 = vpack.c.b16 %v1084, %v1080
      %v1197 = vpack.c.b16 %v1085, %v1081
      %v1198 = vpack.c.b16 %v1086, %v1082
      %v1199 = vpack.c.b16 %v1091, %v1087
      %v1200 = vpack.c.b16 %v1092, %v1088
      %v1201 = vpack.c.b16 %v1093, %v1089
      %v1202 = vpack.c.b16 %v1094, %v1090
      %v1203 = vpack.c.b16 %v1099, %v1095
      %v1204 = vpack.c.b16 %v1100, %v1096
      %v1205 = vpack.c.b16 %v1101, %v1097
      %v1206 = vpack.c.b16 %v1102, %v1098
      %v1207 = vpack.c.b16 %v1107, %v1103
      %v1208 = vpack.c.b16 %v1108, %v1104
      %v1209 = vpack.c.b16 %v1109, %v1105
      %v1210 = vpack.c.b16 %v1110, %v1106
      %v1211 = vpack.c.b16 %v1115, %v1111
      %v1212 = vpack.c.b16 %v1116, %v1112
      %v1213 = vpack.c.b16 %v1117, %v1113
      %v1214 = vpack.c.b16 %v1118, %v1114
      %v1215 = vpack.c.b16 %v1123, %v1119
      %v1216 = vpack.c.b16 %v1124, %v1120
      %v1217 = vpack.c.b16 %v1125, %v1121
      %v1218 = vpack.c.b16 %v1126, %v1122
      %v1219 = vpack.c.b16 %v1131, %v1127
      %v1220 = vpack.c.b16 %v1132, %v1128
      %v1221 = vpack.c.b16 %v1133, %v1129
      %v1222 = vpack.c.b16 %v1134, %v1130
      %v1223 = vpack.c.b16 %v1139, %v1135
      %v1224 = vpack.c.b16 %v1140, %v1136
      %v1225 = vpack.c.b16 %v1141, %v1137
      %v1226 = vpack.c.b16 %v1142, %v1138
      %v1227 = vpack.c.b16 %v1147, %v1143
      %v1228 = vpack.c.b16 %v1148, %v1144
      %v1229 = vpack.c.b16 %v1149, %v1145
      %v1230 = vpack.c.b16 %v1150, %v1146
      %v1231 = vpack.c.b16 %v1155, %v1151
      %v1232 = vpack.c.b16 %v1156, %v1152
      %v1233 = vpack.c.b16 %v1157, %v1153
      %v1234 = vpack.c.b16 %v1158, %v1154
      %v1235 = vpack.c.b16 %v1163, %v1159
      %v1236 = vpack.c.b16 %v1164, %v1160
      %v1237 = vpack.c.b16 %v1165, %v1161
      %v1238 = vpack.c.b16 %v1166, %v1162
      %v1239 = vpack.c.b16 %v1171, %v1167
      %v1240 = vpack.c.b16 %v1172, %v1168
      %v1241 = vpack.c.b16 %v1173, %v1169
      %v1242 = vpack.c.b16 %v1174, %v1170
      %v1243 = vpack.c.b16 %v1179, %v1175
      %v1244 = vpack.c.b16 %v1180, %v1176
      %v1245 = vpack.c.b16 %v1181, %v1177
      %v1246 = vpack.c.b16 %v1182, %v1178
      %1311 = vmatprep.subr.bf16.mxu0 %v1184
      %1312 = vmatpush1.bf16.msra.mxu0 %v1183
      %1313 = vmatprep.subr.bf16.mxu0 %v1188
      %1314 = vmatpush1.bf16.msra.mxu0 %v1187
      %1315 = vmatprep.subr.bf16.mxu0 %v1192
      %1316 = vmatpush1.bf16.msra.mxu0 %v1191
      %1317 = vmatprep.subr.bf16.mxu0 %v1196
      %1318 = vmatpush1.bf16.msra.mxu0 %v1195
      %1319 = vmatprep.subr.bf16.mxu0 %v1200
      %1320 = vmatpush1.bf16.msra.mxu0 %v1199
      %1321 = vmatprep.subr.bf16.mxu0 %v1204
      %1322 = vmatpush1.bf16.msra.mxu0 %v1203
      %1323 = vmatprep.subr.bf16.mxu0 %v1208
      %1324 = vmatpush1.bf16.msra.mxu0 %v1207
      %1325 = vmatprep.subr.bf16.mxu0 %v1212
      %1326 = vmatpush1.bf16.msra.mxu0 %v1211
      %1327 = vmatprep.subr.bf16.mxu0 %v1216
      %1328 = vmatpush1.bf16.msra.mxu0 %v1215
      %1329 = vmatprep.subr.bf16.mxu0 %v1220
      %1330 = vmatpush1.bf16.msra.mxu0 %v1219
      %1331 = vmatprep.subr.bf16.mxu0 %v1224
      %1332 = vmatpush1.bf16.msra.mxu0 %v1223
      %1333 = vmatprep.subr.bf16.mxu0 %v1228
      %1334 = vmatpush1.bf16.msra.mxu0 %v1227
      %1335 = vmatprep.subr.bf16.mxu0 %v1232
      %1336 = vmatpush1.bf16.msra.mxu0 %v1231
      %1337 = vmatprep.subr.bf16.mxu0 %v1236
      %1338 = vmatpush1.bf16.msra.mxu0 %v1235
      %1339 = vmatprep.subr.bf16.mxu0 %v1240
      %1340 = vmatpush1.bf16.msra.mxu0 %v1239
      %1341 = vmatprep.subr.bf16.mxu0 %v1244
      %1342 = vmatpush1.bf16.msra.mxu0 %v1243
      %1343 = vmatprep.mubr.bf16.mxu0 %v904
      %1344 = vmatmul.mubr.bf16.gmra.mrb[0].mxu0 %v903
      %v1345 = vpop.f32.mrb[0].mxu0
      %v1346 = vadd.f32 %v974, %v1345
      %v1347 = vpop.f32.mrb[0].mxu0
      %v1348 = vadd.f32 %v978, %v1347
      %v1349 = vpop.f32.mrb[0].mxu0
      %v1350 = vpop.f32.mrb[0].mxu0
      %1351 = vdwg.mxu0
      %1352 = vmatprep.subr.bf16.mxu0 %v1186
      %1353 = vmatpush1.bf16.msra.mxu0 %v1185
      %1354 = vmatprep.subr.bf16.mxu0 %v1190
      %1355 = vmatpush1.bf16.msra.mxu0 %v1189
      %1356 = vmatprep.subr.bf16.mxu0 %v1194
      %1357 = vmatpush1.bf16.msra.mxu0 %v1193
      %1358 = vmatprep.subr.bf16.mxu0 %v1198
      %1359 = vmatpush1.bf16.msra.mxu0 %v1197
      %1360 = vmatprep.subr.bf16.mxu0 %v1202
      %1361 = vmatpush1.bf16.msra.mxu0 %v1201
      %1362 = vmatprep.subr.bf16.mxu0 %v1206
      %1363 = vmatpush1.bf16.msra.mxu0 %v1205
      %1364 = vmatprep.subr.bf16.mxu0 %v1210
      %1365 = vmatpush1.bf16.msra.mxu0 %v1209
      %1366 = vmatprep.subr.bf16.mxu0 %v1214
      %1367 = vmatpush1.bf16.msra.mxu0 %v1213
      %1368 = vmatprep.subr.bf16.mxu0 %v1218
      %1369 = vmatpush1.bf16.msra.mxu0 %v1217
      %1370 = vmatprep.subr.bf16.mxu0 %v1222
      %1371 = vmatpush1.bf16.msra.mxu0 %v1221
      %1372 = vmatprep.subr.bf16.mxu0 %v1226
      %1373 = vmatpush1.bf16.msra.mxu0 %v1225
      %1374 = vmatprep.subr.bf16.mxu0 %v1230
      %1375 = vmatpush1.bf16.msra.mxu0 %v1229
      %1376 = vmatprep.subr.bf16.mxu0 %v1234
      %1377 = vmatpush1.bf16.msra.mxu0 %v1233
      %1378 = vmatprep.subr.bf16.mxu0 %v1238
      %1379 = vmatpush1.bf16.msra.mxu0 %v1237
      %1380 = vmatprep.subr.bf16.mxu0 %v1242
      %1381 = vmatpush1.bf16.msra.mxu0 %v1241
      %1382 = vmatprep.subr.bf16.mxu0 %v1246
      %1383 = vmatpush1.bf16.msra.mxu0 %v1245
      %1384 = vmatprep.mubr.bf16.mxu0 %v904
      %1385 = vmatmul.mubr.bf16.gmra.mrb[0].mxu0 %v903
      %v1386 = vpop.f32.mrb[0].mxu0
      %v1387 = vadd.f32 %v982, %v1386
      %v1388 = vpop.f32.mrb[0].mxu0
      %v1389 = vadd.f32 %v986, %v1388
      %v1390 = vpop.f32.mrb[0].mxu0
      %v1391 = vpop.f32.mrb[0].mxu0
      %1392 = vdwg.mxu0
      %v1393 = vmax.f32 %v1346, 0.0
      %v1394 = vmax.f32 %v1348, 0.0
      %v1395 = vmax.f32 %v1387, 0.0
      %v1396 = vmax.f32 %v1389, 0.0
      %v1397 = vpack.c.bf16 %v1393, %v1393
      %v1398 = vpack.c.bf16 %v1394, %v1394
      %v1399 = vpack.c.bf16 %v1395, %v1395
      %v1400 = vpack.c.bf16 %v1396, %v1396
      %v1401 = vld [vmem:[#allocation8] sm:$0xff]
      %v1402 = vld [vmem:[#allocation8 + $0x8] sm:$0xff]
      %v1403 = vld [vmem:[#allocation8 + $0x10] sm:$0xff]
      %v1404 = vld [vmem:[#allocation8 + $0x18] sm:$0xff]
      %v1405 = vld [vmem:[#allocation8 + $0x20] sm:$0xff]
      %v1406 = vld [vmem:[#allocation8 + $0x28] sm:$0xff]
      %v1407 = vld [vmem:[#allocation8 + $0x30] sm:$0xff]
      %v1408 = vld [vmem:[#allocation8 + $0x38] sm:$0xff]
      %v1409 = vld [vmem:[#allocation8 + $0x40] sm:$0xff]
      %v1410 = vld [vmem:[#allocation8 + $0x48] sm:$0xff]
      %v1411 = vld [vmem:[#allocation8 + $0x50] sm:$0xff]
      %v1412 = vld [vmem:[#allocation8 + $0x58] sm:$0xff]
      %v1413 = vld [vmem:[#allocation8 + $0x60] sm:$0xff]
      %v1414 = vld [vmem:[#allocation8 + $0x68] sm:$0xff]
      %v1415 = vld [vmem:[#allocation8 + $0x70] sm:$0xff]
      %v1416 = vld [vmem:[#allocation8 + $0x78] sm:$0xff]
      %v1417 = vld [vmem:[#allocation8 + $0x80] sm:$0xff]
      %v1418 = vld [vmem:[#allocation8 + $0x88] sm:$0xff]
      %v1419 = vld [vmem:[#allocation8 + $0x90] sm:$0xff]
      %v1420 = vld [vmem:[#allocation8 + $0x98] sm:$0xff]
      %v1421 = vld [vmem:[#allocation8 + $0xa0] sm:$0xff]
      %v1422 = vld [vmem:[#allocation8 + $0xa8] sm:$0xff]
      %v1423 = vld [vmem:[#allocation8 + $0xb0] sm:$0xff]
      %v1424 = vld [vmem:[#allocation8 + $0xb8] sm:$0xff]
      %v1425 = vld [vmem:[#allocation8 + $0xc0] sm:$0xff]
      %v1426 = vld [vmem:[#allocation8 + $0xc8] sm:$0xff]
      %v1427 = vld [vmem:[#allocation8 + $0xd0] sm:$0xff]
      %v1428 = vld [vmem:[#allocation8 + $0xd8] sm:$0xff]
      %v1429 = vld [vmem:[#allocation8 + $0xe0] sm:$0xff]
      %v1430 = vld [vmem:[#allocation8 + $0xe8] sm:$0xff]
      %v1431 = vld [vmem:[#allocation8 + $0xf0] sm:$0xff]
      %v1432 = vld [vmem:[#allocation8 + $0xf8] sm:$0xff]
      %v1433 = vld [vmem:[#allocation8 + $0x100] sm:$0xff]
      %v1434 = vld [vmem:[#allocation8 + $0x108] sm:$0xff]
      %v1435 = vld [vmem:[#allocation8 + $0x110] sm:$0xff]
      %v1436 = vld [vmem:[#allocation8 + $0x118] sm:$0xff]
      %v1437 = vld [vmem:[#allocation8 + $0x120] sm:$0xff]
      %v1438 = vld [vmem:[#allocation8 + $0x128] sm:$0xff]
      %v1439 = vld [vmem:[#allocation8 + $0x130] sm:$0xff]
      %v1440 = vld [vmem:[#allocation8 + $0x138] sm:$0xff]
      %v1441 = vld [vmem:[#allocation8 + $0x140] sm:$0xff]
      %v1442 = vld [vmem:[#allocation8 + $0x148] sm:$0xff]
      %v1443 = vld [vmem:[#allocation8 + $0x150] sm:$0xff]
      %v1444 = vld [vmem:[#allocation8 + $0x158] sm:$0xff]
      %v1445 = vld [vmem:[#allocation8 + $0x160] sm:$0xff]
      %v1446 = vld [vmem:[#allocation8 + $0x168] sm:$0xff]
      %v1447 = vld [vmem:[#allocation8 + $0x170] sm:$0xff]
      %v1448 = vld [vmem:[#allocation8 + $0x178] sm:$0xff]
      %v1449 = vld [vmem:[#allocation8 + $0x180] sm:$0xff]
      %v1450 = vld [vmem:[#allocation8 + $0x188] sm:$0xff]
      %v1451 = vld [vmem:[#allocation8 + $0x190] sm:$0xff]
      %v1452 = vld [vmem:[#allocation8 + $0x198] sm:$0xff]
      %v1453 = vld [vmem:[#allocation8 + $0x1a0] sm:$0xff]
      %v1454 = vld [vmem:[#allocation8 + $0x1a8] sm:$0xff]
      %v1455 = vld [vmem:[#allocation8 + $0x1b0] sm:$0xff]
      %v1456 = vld [vmem:[#allocation8 + $0x1b8] sm:$0xff]
      %v1457 = vld [vmem:[#allocation8 + $0x1c0] sm:$0xff]
      %v1458 = vld [vmem:[#allocation8 + $0x1c8] sm:$0xff]
      %v1459 = vld [vmem:[#allocation8 + $0x1d0] sm:$0xff]
      %v1460 = vld [vmem:[#allocation8 + $0x1d8] sm:$0xff]
      %v1461 = vld [vmem:[#allocation8 + $0x1e0] sm:$0xff]
      %v1462 = vld [vmem:[#allocation8 + $0x1e8] sm:$0xff]
      %v1463 = vld [vmem:[#allocation8 + $0x1f0] sm:$0xff]
      %v1464 = vld [vmem:[#allocation8 + $0x1f8] sm:$0xff]
      %v1465 = vld [vmem:[%s10] sm:$0x3]
      %v1467 = vlaneseq
      %v1468 = vshrl.u32 %v1467, 7
      %v1469 = vsub.s32 0, %v1468
      %v1470 = vrot.slane %v1465, %v1469
      %v1471 = vlaneseq
      %v1472 = vshrl.u32 %v1471, 7
      %v1473 = vsub.s32 1, %v1472
      %v1474 = vrot.slane %v1465, %v1473
      %v1541 = vunpack.c.l.b16 %v1401
      %v1542 = vunpack.c.h.b16 %v1401
      %v1543 = vunpack.c.l.b16 %v1402
      %v1544 = vunpack.c.h.b16 %v1402
      %v1545 = vunpack.c.l.b16 %v1403
      %v1546 = vunpack.c.h.b16 %v1403
      %v1547 = vunpack.c.l.b16 %v1404
      %v1548 = vunpack.c.h.b16 %v1404
      %v1549 = vunpack.c.l.b16 %v1405
      %v1550 = vunpack.c.h.b16 %v1405
      %v1551 = vunpack.c.l.b16 %v1406
      %v1552 = vunpack.c.h.b16 %v1406
      %v1553 = vunpack.c.l.b16 %v1407
      %v1554 = vunpack.c.h.b16 %v1407
      %v1555 = vunpack.c.l.b16 %v1408
      %v1556 = vunpack.c.h.b16 %v1408
      %v1557 = vunpack.c.l.b16 %v1409
      %v1558 = vunpack.c.h.b16 %v1409
      %v1559 = vunpack.c.l.b16 %v1410
      %v1560 = vunpack.c.h.b16 %v1410
      %v1561 = vunpack.c.l.b16 %v1411
      %v1562 = vunpack.c.h.b16 %v1411
      %v1563 = vunpack.c.l.b16 %v1412
      %v1564 = vunpack.c.h.b16 %v1412
      %v1565 = vunpack.c.l.b16 %v1413
      %v1566 = vunpack.c.h.b16 %v1413
      %v1567 = vunpack.c.l.b16 %v1414
      %v1568 = vunpack.c.h.b16 %v1414
      %v1569 = vunpack.c.l.b16 %v1415
      %v1570 = vunpack.c.h.b16 %v1415
      %v1571 = vunpack.c.l.b16 %v1416
      %v1572 = vunpack.c.h.b16 %v1416
      %v1573 = vunpack.c.l.b16 %v1417
      %v1574 = vunpack.c.h.b16 %v1417
      %v1575 = vunpack.c.l.b16 %v1418
      %v1576 = vunpack.c.h.b16 %v1418
      %v1577 = vunpack.c.l.b16 %v1419
      %v1578 = vunpack.c.h.b16 %v1419
      %v1579 = vunpack.c.l.b16 %v1420
      %v1580 = vunpack.c.h.b16 %v1420
      %v1581 = vunpack.c.l.b16 %v1421
      %v1582 = vunpack.c.h.b16 %v1421
      %v1583 = vunpack.c.l.b16 %v1422
      %v1584 = vunpack.c.h.b16 %v1422
      %v1585 = vunpack.c.l.b16 %v1423
      %v1586 = vunpack.c.h.b16 %v1423
      %v1587 = vunpack.c.l.b16 %v1424
      %v1588 = vunpack.c.h.b16 %v1424
      %v1589 = vunpack.c.l.b16 %v1425
      %v1590 = vunpack.c.h.b16 %v1425
      %v1591 = vunpack.c.l.b16 %v1426
      %v1592 = vunpack.c.h.b16 %v1426
      %v1593 = vunpack.c.l.b16 %v1427
      %v1594 = vunpack.c.h.b16 %v1427
      %v1595 = vunpack.c.l.b16 %v1428
      %v1596 = vunpack.c.h.b16 %v1428
      %v1597 = vunpack.c.l.b16 %v1429
      %v1598 = vunpack.c.h.b16 %v1429
      %v1599 = vunpack.c.l.b16 %v1430
      %v1600 = vunpack.c.h.b16 %v1430
      %v1601 = vunpack.c.l.b16 %v1431
      %v1602 = vunpack.c.h.b16 %v1431
      %v1603 = vunpack.c.l.b16 %v1432
      %v1604 = vunpack.c.h.b16 %v1432
      %v1605 = vunpack.c.l.b16 %v1433
      %v1606 = vunpack.c.h.b16 %v1433
      %v1607 = vunpack.c.l.b16 %v1434
      %v1608 = vunpack.c.h.b16 %v1434
      %v1609 = vunpack.c.l.b16 %v1435
      %v1610 = vunpack.c.h.b16 %v1435
      %v1611 = vunpack.c.l.b16 %v1436
      %v1612 = vunpack.c.h.b16 %v1436
      %v1613 = vunpack.c.l.b16 %v1437
      %v1614 = vunpack.c.h.b16 %v1437
      %v1615 = vunpack.c.l.b16 %v1438
      %v1616 = vunpack.c.h.b16 %v1438
      %v1617 = vunpack.c.l.b16 %v1439
      %v1618 = vunpack.c.h.b16 %v1439
      %v1619 = vunpack.c.l.b16 %v1440
      %v1620 = vunpack.c.h.b16 %v1440
      %v1621 = vunpack.c.l.b16 %v1441
      %v1622 = vunpack.c.h.b16 %v1441
      %v1623 = vunpack.c.l.b16 %v1442
      %v1624 = vunpack.c.h.b16 %v1442
      %v1625 = vunpack.c.l.b16 %v1443
      %v1626 = vunpack.c.h.b16 %v1443
      %v1627 = vunpack.c.l.b16 %v1444
      %v1628 = vunpack.c.h.b16 %v1444
      %v1629 = vunpack.c.l.b16 %v1445
      %v1630 = vunpack.c.h.b16 %v1445
      %v1631 = vunpack.c.l.b16 %v1446
      %v1632 = vunpack.c.h.b16 %v1446
      %v1633 = vunpack.c.l.b16 %v1447
      %v1634 = vunpack.c.h.b16 %v1447
      %v1635 = vunpack.c.l.b16 %v1448
      %v1636 = vunpack.c.h.b16 %v1448
      %v1637 = vunpack.c.l.b16 %v1449
      %v1638 = vunpack.c.h.b16 %v1449
      %v1639 = vunpack.c.l.b16 %v1450
      %v1640 = vunpack.c.h.b16 %v1450
      %v1641 = vunpack.c.l.b16 %v1451
      %v1642 = vunpack.c.h.b16 %v1451
      %v1643 = vunpack.c.l.b16 %v1452
      %v1644 = vunpack.c.h.b16 %v1452
      %v1645 = vunpack.c.l.b16 %v1453
      %v1646 = vunpack.c.h.b16 %v1453
      %v1647 = vunpack.c.l.b16 %v1454
      %v1648 = vunpack.c.h.b16 %v1454
      %v1649 = vunpack.c.l.b16 %v1455
      %v1650 = vunpack.c.h.b16 %v1455
      %v1651 = vunpack.c.l.b16 %v1456
      %v1652 = vunpack.c.h.b16 %v1456
      %v1653 = vunpack.c.l.b16 %v1457
      %v1654 = vunpack.c.h.b16 %v1457
      %v1655 = vunpack.c.l.b16 %v1458
      %v1656 = vunpack.c.h.b16 %v1458
      %v1657 = vunpack.c.l.b16 %v1459
      %v1658 = vunpack.c.h.b16 %v1459
      %v1659 = vunpack.c.l.b16 %v1460
      %v1660 = vunpack.c.h.b16 %v1460
      %v1661 = vunpack.c.l.b16 %v1461
      %v1662 = vunpack.c.h.b16 %v1461
      %v1663 = vunpack.c.l.b16 %v1462
      %v1664 = vunpack.c.h.b16 %v1462
      %v1665 = vunpack.c.l.b16 %v1463
      %v1666 = vunpack.c.h.b16 %v1463
      %v1667 = vunpack.c.l.b16 %v1464
      %v1668 = vunpack.c.h.b16 %v1464
      %v1669 = vpack.c.b16 %v1543, %v1541
      %v1670 = vpack.c.b16 %v1544, %v1542
      %v1671 = vpack.c.b16 %v1547, %v1545
      %v1672 = vpack.c.b16 %v1548, %v1546
      %v1673 = vpack.c.b16 %v1551, %v1549
      %v1674 = vpack.c.b16 %v1552, %v1550
      %v1675 = vpack.c.b16 %v1555, %v1553
      %v1676 = vpack.c.b16 %v1556, %v1554
      %v1677 = vpack.c.b16 %v1559, %v1557
      %v1678 = vpack.c.b16 %v1560, %v1558
      %v1679 = vpack.c.b16 %v1563, %v1561
      %v1680 = vpack.c.b16 %v1564, %v1562
      %v1681 = vpack.c.b16 %v1567, %v1565
      %v1682 = vpack.c.b16 %v1568, %v1566
      %v1683 = vpack.c.b16 %v1571, %v1569
      %v1684 = vpack.c.b16 %v1572, %v1570
      %v1685 = vpack.c.b16 %v1575, %v1573
      %v1686 = vpack.c.b16 %v1576, %v1574
      %v1687 = vpack.c.b16 %v1579, %v1577
      %v1688 = vpack.c.b16 %v1580, %v1578
      %v1689 = vpack.c.b16 %v1583, %v1581
      %v1690 = vpack.c.b16 %v1584, %v1582
      %v1691 = vpack.c.b16 %v1587, %v1585
      %v1692 = vpack.c.b16 %v1588, %v1586
      %v1693 = vpack.c.b16 %v1591, %v1589
      %v1694 = vpack.c.b16 %v1592, %v1590
      %v1695 = vpack.c.b16 %v1595, %v1593
      %v1696 = vpack.c.b16 %v1596, %v1594
      %v1697 = vpack.c.b16 %v1599, %v1597
      %v1698 = vpack.c.b16 %v1600, %v1598
      %v1699 = vpack.c.b16 %v1603, %v1601
      %v1700 = vpack.c.b16 %v1604, %v1602
      %v1701 = vpack.c.b16 %v1607, %v1605
      %v1702 = vpack.c.b16 %v1608, %v1606
      %v1703 = vpack.c.b16 %v1611, %v1609
      %v1704 = vpack.c.b16 %v1612, %v1610
      %v1705 = vpack.c.b16 %v1615, %v1613
      %v1706 = vpack.c.b16 %v1616, %v1614
      %v1707 = vpack.c.b16 %v1619, %v1617
      %v1708 = vpack.c.b16 %v1620, %v1618
      %v1709 = vpack.c.b16 %v1623, %v1621
      %v1710 = vpack.c.b16 %v1624, %v1622
      %v1711 = vpack.c.b16 %v1627, %v1625
      %v1712 = vpack.c.b16 %v1628, %v1626
      %v1713 = vpack.c.b16 %v1631, %v1629
      %v1714 = vpack.c.b16 %v1632, %v1630
      %v1715 = vpack.c.b16 %v1635, %v1633
      %v1716 = vpack.c.b16 %v1636, %v1634
      %v1717 = vpack.c.b16 %v1639, %v1637
      %v1718 = vpack.c.b16 %v1640, %v1638
      %v1719 = vpack.c.b16 %v1643, %v1641
      %v1720 = vpack.c.b16 %v1644, %v1642
      %v1721 = vpack.c.b16 %v1647, %v1645
      %v1722 = vpack.c.b16 %v1648, %v1646
      %v1723 = vpack.c.b16 %v1651, %v1649
      %v1724 = vpack.c.b16 %v1652, %v1650
      %v1725 = vpack.c.b16 %v1655, %v1653
      %v1726 = vpack.c.b16 %v1656, %v1654
      %v1727 = vpack.c.b16 %v1659, %v1657
      %v1728 = vpack.c.b16 %v1660, %v1658
      %v1729 = vpack.c.b16 %v1663, %v1661
      %v1730 = vpack.c.b16 %v1664, %v1662
      %v1731 = vpack.c.b16 %v1667, %v1665
      %v1732 = vpack.c.b16 %v1668, %v1666
      %1797 = vmatprep.subr.bf16.mxu0 %v1670
      %1798 = vmatpush1.bf16.msra.mxu0 %v1669
      %1799 = vmatprep.subr.bf16.mxu0 %v1672
      %1800 = vmatpush1.bf16.msra.mxu0 %v1671
      %1801 = vmatprep.subr.bf16.mxu0 %v1674
      %1802 = vmatpush1.bf16.msra.mxu0 %v1673
      %1803 = vmatprep.subr.bf16.mxu0 %v1676
      %1804 = vmatpush1.bf16.msra.mxu0 %v1675
      %1805 = vmatprep.subr.bf16.mxu0 %v1678
      %1806 = vmatpush1.bf16.msra.mxu0 %v1677
      %1807 = vmatprep.subr.bf16.mxu0 %v1680
      %1808 = vmatpush1.bf16.msra.mxu0 %v1679
      %1809 = vmatprep.subr.bf16.mxu0 %v1682
      %1810 = vmatpush1.bf16.msra.mxu0 %v1681
      %1811 = vmatprep.subr.bf16.mxu0 %v1684
      %1812 = vmatpush1.bf16.msra.mxu0 %v1683
      %1813 = vmatprep.subr.bf16.mxu0 %v1686
      %1814 = vmatpush1.bf16.msra.mxu0 %v1685
      %1815 = vmatprep.subr.bf16.mxu0 %v1688
      %1816 = vmatpush1.bf16.msra.mxu0 %v1687
      %1817 = vmatprep.subr.bf16.mxu0 %v1690
      %1818 = vmatpush1.bf16.msra.mxu0 %v1689
      %1819 = vmatprep.subr.bf16.mxu0 %v1692
      %1820 = vmatpush1.bf16.msra.mxu0 %v1691
      %1821 = vmatprep.subr.bf16.mxu0 %v1694
      %1822 = vmatpush1.bf16.msra.mxu0 %v1693
      %1823 = vmatprep.subr.bf16.mxu0 %v1696
      %1824 = vmatpush1.bf16.msra.mxu0 %v1695
      %1825 = vmatprep.subr.bf16.mxu0 %v1698
      %1826 = vmatpush1.bf16.msra.mxu0 %v1697
      %1827 = vmatprep.subr.bf16.mxu0 %v1700
      %1828 = vmatpush1.bf16.msra.mxu0 %v1699
      %1829 = vmatprep.mubr.bf16.mxu0 %v1398
      %1830 = vmatmul.mubr.bf16.gmra.mrb[0].mxu0 %v1397
      %v1831 = vpop.f32.mrb[0].mxu0
      %v1832 = vadd.f32 %v1470, %v1831
      %v1833 = vpop.f32.mrb[0].mxu0
      %v1834 = vadd.f32 %v1474, %v1833
      %v1835 = vpop.f32.mrb[0].mxu0
      %v1836 = vpop.f32.mrb[0].mxu0
      %1837 = vdwg.mxu0
      %1838 = vmatprep.subr.bf16.mxu0 %v1702
      %1839 = vmatpush1.bf16.msra.mxu0 %v1701
      %1840 = vmatprep.subr.bf16.mxu0 %v1704
      %1841 = vmatpush1.bf16.msra.mxu0 %v1703
      %1842 = vmatprep.subr.bf16.mxu0 %v1706
      %1843 = vmatpush1.bf16.msra.mxu0 %v1705
      %1844 = vmatprep.subr.bf16.mxu0 %v1708
      %1845 = vmatpush1.bf16.msra.mxu0 %v1707
      %1846 = vmatprep.subr.bf16.mxu0 %v1710
      %1847 = vmatpush1.bf16.msra.mxu0 %v1709
      %1848 = vmatprep.subr.bf16.mxu0 %v1712
      %1849 = vmatpush1.bf16.msra.mxu0 %v1711
      %1850 = vmatprep.subr.bf16.mxu0 %v1714
      %1851 = vmatpush1.bf16.msra.mxu0 %v1713
      %1852 = vmatprep.subr.bf16.mxu0 %v1716
      %1853 = vmatpush1.bf16.msra.mxu0 %v1715
      %1854 = vmatprep.subr.bf16.mxu0 %v1718
      %1855 = vmatpush1.bf16.msra.mxu0 %v1717
      %1856 = vmatprep.subr.bf16.mxu0 %v1720
      %1857 = vmatpush1.bf16.msra.mxu0 %v1719
      %1858 = vmatprep.subr.bf16.mxu0 %v1722
      %1859 = vmatpush1.bf16.msra.mxu0 %v1721
      %1860 = vmatprep.subr.bf16.mxu0 %v1724
      %1861 = vmatpush1.bf16.msra.mxu0 %v1723
      %1862 = vmatprep.subr.bf16.mxu0 %v1726
      %1863 = vmatpush1.bf16.msra.mxu0 %v1725
      %1864 = vmatprep.subr.bf16.mxu0 %v1728
      %1865 = vmatpush1.bf16.msra.mxu0 %v1727
      %1866 = vmatprep.subr.bf16.mxu0 %v1730
      %1867 = vmatpush1.bf16.msra.mxu0 %v1729
      %1868 = vmatprep.subr.bf16.mxu0 %v1732
      %1869 = vmatpush1.bf16.msra.mxu0 %v1731
      %1870 = vmatprep.mubr.bf16.mxu0 %v1400
      %1871 = vmatmul.mubr.bf16.gmra.mrb[0].mxu0 %v1399
      %v1872 = vpop.f32.mrb[0].mxu0
      %v1873 = vadd.f32 %v1832, %v1872
      %v1874 = vpop.f32.mrb[0].mxu0
      %v1875 = vadd.f32 %v1834, %v1874
      %v1876 = vpop.f32.mrb[0].mxu0
      %v1877 = vpop.f32.mrb[0].mxu0
      %1878 = vdwg.mxu0
      %v1879 = vmax.f32 %v1873, 0.0
      %v1880 = vmax.f32 %v1875, 0.0
      %v1881 = vpack.c.bf16 %v1879, %v1879
      %v1882 = vpack.c.bf16 %v1880, %v1880
      %v1883 = vld [vmem:[#allocation10] sm:$0xf]
      %v1884 = vld [vmem:[#allocation10 + $0x4] sm:$0xf]
      %v1885 = vld [vmem:[#allocation10 + $0x8] sm:$0xf]
      %v1886 = vld [vmem:[#allocation10 + $0xc] sm:$0xf]
      %v1887 = vld [vmem:[#allocation10 + $0x10] sm:$0xf]
      %v1888 = vld [vmem:[#allocation10 + $0x14] sm:$0xf]
      %v1889 = vld [vmem:[#allocation10 + $0x18] sm:$0xf]
      %v1890 = vld [vmem:[#allocation10 + $0x1c] sm:$0xf]
      %v1891 = vld [vmem:[#allocation10 + $0x20] sm:$0xf]
      %v1892 = vld [vmem:[#allocation10 + $0x24] sm:$0xf]
      %v1893 = vld [vmem:[#allocation10 + $0x28] sm:$0xf]
      %v1894 = vld [vmem:[#allocation10 + $0x2c] sm:$0xf]
      %v1895 = vld [vmem:[#allocation10 + $0x30] sm:$0xf]
      %v1896 = vld [vmem:[#allocation10 + $0x34] sm:$0xf]
      %v1897 = vld [vmem:[#allocation10 + $0x38] sm:$0xf]
      %v1898 = vld [vmem:[#allocation10 + $0x3c] sm:$0xf]
      %v1899 = vld [vmem:[#allocation10 + $0x40] sm:$0xf]
      %v1900 = vld [vmem:[#allocation10 + $0x44] sm:$0xf]
      %v1901 = vld [vmem:[#allocation10 + $0x48] sm:$0xf]
      %v1902 = vld [vmem:[#allocation10 + $0x4c] sm:$0xf]
      %v1903 = vld [vmem:[#allocation10 + $0x50] sm:$0xf]
      %v1904 = vld [vmem:[#allocation10 + $0x54] sm:$0xf]
      %v1905 = vld [vmem:[#allocation10 + $0x58] sm:$0xf]
      %v1906 = vld [vmem:[#allocation10 + $0x5c] sm:$0xf]
      %v1907 = vld [vmem:[#allocation10 + $0x60] sm:$0xf]
      %v1908 = vld [vmem:[#allocation10 + $0x64] sm:$0xf]
      %v1909 = vld [vmem:[#allocation10 + $0x68] sm:$0xf]
      %v1910 = vld [vmem:[#allocation10 + $0x6c] sm:$0xf]
      %v1911 = vld [vmem:[#allocation10 + $0x70] sm:$0xf]
      %v1912 = vld [vmem:[#allocation10 + $0x74] sm:$0xf]
      %v1913 = vld [vmem:[#allocation10 + $0x78] sm:$0xf]
      %v1914 = vld [vmem:[#allocation10 + $0x7c] sm:$0xf]
      %v1915 = vld [vmem:[%s12] sm:$0x1]
      %v1917 = vlaneseq
      %v1918 = vshrl.u32 %v1917, 7
      %v1919 = vsub.s32 0, %v1918
      %v1920 = vrot.slane %v1915, %v1919
      %v1954 = vunpack.c.l.b16 %v1883
      %v1955 = vunpack.c.l.b16 %v1884
      %v1956 = vunpack.c.l.b16 %v1885
      %v1957 = vunpack.c.l.b16 %v1886
      %v1958 = vunpack.c.l.b16 %v1887
      %v1959 = vunpack.c.l.b16 %v1888
      %v1960 = vunpack.c.l.b16 %v1889
      %v1961 = vunpack.c.l.b16 %v1890
      %v1962 = vunpack.c.l.b16 %v1891
      %v1963 = vunpack.c.l.b16 %v1892
      %v1964 = vunpack.c.l.b16 %v1893
      %v1965 = vunpack.c.l.b16 %v1894
      %v1966 = vunpack.c.l.b16 %v1895
      %v1967 = vunpack.c.l.b16 %v1896
      %v1968 = vunpack.c.l.b16 %v1897
      %v1969 = vunpack.c.l.b16 %v1898
      %v1970 = vunpack.c.l.b16 %v1899
      %v1971 = vunpack.c.l.b16 %v1900
      %v1972 = vunpack.c.l.b16 %v1901
      %v1973 = vunpack.c.l.b16 %v1902
      %v1974 = vunpack.c.l.b16 %v1903
      %v1975 = vunpack.c.l.b16 %v1904
      %v1976 = vunpack.c.l.b16 %v1905
      %v1977 = vunpack.c.l.b16 %v1906
      %v1978 = vunpack.c.l.b16 %v1907
      %v1979 = vunpack.c.l.b16 %v1908
      %v1980 = vunpack.c.l.b16 %v1909
      %v1981 = vunpack.c.l.b16 %v1910
      %v1982 = vunpack.c.l.b16 %v1911
      %v1983 = vunpack.c.l.b16 %v1912
      %v1984 = vunpack.c.l.b16 %v1913
      %v1985 = vunpack.c.l.b16 %v1914
      %v1986 = vpack.c.b16 %v1955, %v1954
      %v1987 = vpack.c.b16 %v1957, %v1956
      %v1988 = vpack.c.b16 %v1959, %v1958
      %v1989 = vpack.c.b16 %v1961, %v1960
      %v1990 = vpack.c.b16 %v1963, %v1962
      %v1991 = vpack.c.b16 %v1965, %v1964
      %v1992 = vpack.c.b16 %v1967, %v1966
      %v1993 = vpack.c.b16 %v1969, %v1968
      %v1994 = vpack.c.b16 %v1971, %v1970
      %v1995 = vpack.c.b16 %v1973, %v1972
      %v1996 = vpack.c.b16 %v1975, %v1974
      %v1997 = vpack.c.b16 %v1977, %v1976
      %v1998 = vpack.c.b16 %v1979, %v1978
      %v1999 = vpack.c.b16 %v1981, %v1980
      %v2000 = vpack.c.b16 %v1983, %v1982
      %v2001 = vpack.c.b16 %v1985, %v1984
      %2018 = vmatprep.subr.bf16.mxu0 0
      %2019 = vmatpush1.bf16.msra.mxu0 %v1986
      %2020 = vmatprep.subr.bf16.mxu0 0
      %2021 = vmatpush1.bf16.msra.mxu0 %v1987
      %2022 = vmatprep.subr.bf16.mxu0 0
      %2023 = vmatpush1.bf16.msra.mxu0 %v1988
      %2024 = vmatprep.subr.bf16.mxu0 0
      %2025 = vmatpush1.bf16.msra.mxu0 %v1989
      %2026 = vmatprep.subr.bf16.mxu0 0
      %2027 = vmatpush1.bf16.msra.mxu0 %v1990
      %2028 = vmatprep.subr.bf16.mxu0 0
      %2029 = vmatpush1.bf16.msra.mxu0 %v1991
      %2030 = vmatprep.subr.bf16.mxu0 0
      %2031 = vmatpush1.bf16.msra.mxu0 %v1992
      %2032 = vmatprep.subr.bf16.mxu0 0
      %2033 = vmatpush1.bf16.msra.mxu0 %v1993
      %2034 = vmatprep.subr.bf16.mxu0 0
      %2035 = vmatpush1.bf16.msra.mxu0 %v1994
      %2036 = vmatprep.subr.bf16.mxu0 0
      %2037 = vmatpush1.bf16.msra.mxu0 %v1995
      %2038 = vmatprep.subr.bf16.mxu0 0
      %2039 = vmatpush1.bf16.msra.mxu0 %v1996
      %2040 = vmatprep.subr.bf16.mxu0 0
      %2041 = vmatpush1.bf16.msra.mxu0 %v1997
      %2042 = vmatprep.subr.bf16.mxu0 0
      %2043 = vmatpush1.bf16.msra.mxu0 %v1998
      %2044 = vmatprep.subr.bf16.mxu0 0
      %2045 = vmatpush1.bf16.msra.mxu0 %v1999
      %2046 = vmatprep.subr.bf16.mxu0 0
      %2047 = vmatpush1.bf16.msra.mxu0 %v2000
      %2048 = vmatprep.subr.bf16.mxu0 0
      %2049 = vmatpush1.bf16.msra.mxu0 %v2001
      %2050 = vmatprep.mubr.bf16.mxu0 %v1882
      %2051 = vmatmul.mubr.bf16.gmra.mrb[0].mxu0 %v1881
      %v2052 = vpop.f32.mrb[0].mxu0
      %v2053 = vadd.f32 %v1920, %v2052
      %v2054 = vpop.f32.mrb[0].mxu0
      %v2055 = vpop.f32.mrb[0].mxu0
      %v2056 = vpop.f32.mrb[0].mxu0
      %2057 = vdwg.mxu0
      %2058 = vst [vmem:[%s13] sm:$0xff] %v2053
    $region81: #{_stn3d_pallas.1} parent=1 // pred_fallthru
      _
    // Predicated region
    $region82: #{_stn3d_pallas.1} parent=1 // pred_check
      _
    $region83: #{_stn3d_pallas.1} parent=1 // pred_check_branch
      %2060 = sbr.rel (0) target = $region85
    $region84: #{_stn3d_pallas.1} parent=1 // pred_region
      _
    $region85: #{_stn3d_pallas.1} parent=1 // pred_fallthru
      _
    // Predicated region
    $region86: #{_stn3d_pallas.1} parent=1 // pred_check
      _
    $region87: #{_stn3d_pallas.1} parent=1 // pred_check_branch
      %2062 = sbr.rel (0) target = $region89
    $region88: #{_stn3d_pallas.1} parent=1 // pred_region
      _
    $region89: #{_stn3d_pallas.1} parent=1 // pred_fallthru
      _
    %2063 = vsyncpa [#allocation4], 1
    %2064 = vsyncpa [#allocation6], 1
    %2065 = vsyncpa [#allocation9], 1

</llo_original>
